<compile_context>
chip_gen: v6e
topology: v6e:2x2x1
jax: 0.10.0
libtpu: 0.0.40
codegen_flags: <defaults>
</compile_context>

<pallas_src>
import numpy as np
import jax
import jax.numpy as jnp
from jax.experimental import pallas as pl
from jax.experimental.pallas import tpu as pltpu

# ---- small synthetic BERT config (shapes consistent with the module) ----
B = 2            # batch
S = 8            # sequence length
H = 32           # hidden size ("768" in the real model)
NH = 2           # attention heads
DH = H // NH     # head dim
FF = 64          # feed-forward intermediate size
L = 2            # encoder layers
VOCAB = 50       # vocab size
NUM_NUMERIC = 9  # len(continuous_features)
NUM_PAD = 16     # numeric feature dim zero-padded for clean tiling
NUM_CLASSES = 2
CLS_PAD = 128    # lane-dense classifier output tile (valid cols sliced outside)
LN_EPS = 1e-12
SCALE = 1.0 / float(np.sqrt(DH))


# ----------------------------- in-kernel helpers -----------------------------

def _layer_norm(x, g, b, eps=LN_EPS):
    mean = jnp.mean(x, axis=-1, keepdims=True)
    var = jnp.mean(jnp.square(x - mean), axis=-1, keepdims=True)
    return (x - mean) * jax.lax.rsqrt(var + eps) * g + b


# ----------------------------- fused forward kernel -----------------------------
# grid = (B, L): batch element per "parallel" step, transformer layer per
# "arbitrary" step.  Running activation (S, H) lives in a VMEM scratch.
# Embedding LayerNorm is fused into l==0; the classifier head into l==L-1.

def _fused_kernel(addmask_ref, x0_ref, embg_ref, embb_ref,
                  wqkv_ref, bqkv_ref, wo_ref, bo_ref,
                  ln1g_ref, ln1b_ref, w1_ref, b1_ref,
                  w2_ref, b2_ref, ln2g_ref, ln2b_ref,
                  num_ref, wnum_ref, bnum_ref, wcls_ref, bcls_ref,
                  logits_ref, x_sc):
    l = pl.program_id(1)

    @pl.when(l == 0)
    def _():
        # embedding LayerNorm (no residual) — fused into the first layer step.
        x_sc[...] = _layer_norm(x0_ref[0], embg_ref[...], embb_ref[...])

    x = x_sc[...]                 # (S, H), VMEM-resident across layers
    addmask = addmask_ref[0]      # (1, S) additive mask (0 attend / -1e9 masked)

    # --- fused QKV projection: one (S, H) @ (H, 3H) matmul ---
    qkv = jnp.dot(x, wqkv_ref[0], preferred_element_type=jnp.float32) + bqkv_ref[0]

    # --- per-head attention via static lane slices (no HBM transposes) ---
    ctx_heads = []
    for h in range(NH):           # static unroll over heads
        qh = qkv[:, h * DH:(h + 1) * DH]                       # (S, DH)
        kh = qkv[:, H + h * DH:H + (h + 1) * DH]               # (S, DH)
        vh = qkv[:, 2 * H + h * DH:2 * H + (h + 1) * DH]       # (S, DH)
        s = jnp.einsum("qd,kd->qk", qh, kh,
                       preferred_element_type=jnp.float32) * SCALE + addmask
        m = jnp.max(s, axis=-1, keepdims=True)
        p = jnp.exp(s - m)
        p = p * pl.reciprocal(jnp.sum(p, axis=-1, keepdims=True), approx=True)
        ctx_heads.append(jnp.dot(p, vh, preferred_element_type=jnp.float32))
    ctx = jnp.concatenate(ctx_heads, axis=-1)                  # (S, H)

    # --- output projection + add & LayerNorm (post-LN) ---
    attn_out = jnp.dot(ctx, wo_ref[0], preferred_element_type=jnp.float32) + bo_ref[0]
    x1 = _layer_norm(attn_out + x, ln1g_ref[0], ln1b_ref[0])

    # --- feed-forward block + add & LayerNorm ---
    # TODO(synk): BERT reference uses exact erf-GELU; tanh-approx GELU here (~1e-3 diff).
    ffn = jax.nn.gelu(
        jnp.dot(x1, w1_ref[0], preferred_element_type=jnp.float32) + b1_ref[0],
        approximate=True)
    ffn = jnp.dot(ffn, w2_ref[0], preferred_element_type=jnp.float32) + b2_ref[0]
    x2 = _layer_norm(ffn + x1, ln2g_ref[0], ln2b_ref[0])

    x_sc[...] = x2

    # --- fused head at the last layer: CLS slice + numeric linear + classifier ---
    @pl.when(l == L - 1)
    def _():
        text = x2[0:1, :]                                       # CLS row (1, H)
        numeric = jnp.dot(num_ref[0], wnum_ref[...],
                          preferred_element_type=jnp.float32) + bnum_ref[...]  # (1, H)
        # classifier(concat(text, numeric)) == text @ Wc[:H] + numeric @ Wc[H:] + b
        logits = (jnp.dot(text, wcls_ref[0:H, :], preferred_element_type=jnp.float32)
                  + jnp.dot(numeric, wcls_ref[H:2 * H, :],
                            preferred_element_type=jnp.float32)
                  + bcls_ref[...])                              # (1, CLS_PAD)
        logits_ref[0] = logits


def fused_forward(params, x0, addmask, numeric_pad):
    """One pallas_call: embedding-LN + L transformer layers + head.

    x0: (B,S,H) raw embeddings, addmask: (B,1,S), numeric_pad: (B,1,NUM_PAD).
    Returns lane-dense logits (B, 1, CLS_PAD); valid columns sliced outside."""
    def wspec(d1, d2):
        return pl.BlockSpec((1, d1, d2), lambda b, l: (l, 0, 0))

    def const2(d1, d2):
        return pl.BlockSpec((d1, d2), lambda b, l: (0, 0))

    in_specs = [
        pl.BlockSpec((1, 1, S), lambda b, l: (b, 0, 0)),   # additive mask
        pl.BlockSpec((1, S, H), lambda b, l: (b, 0, 0)),   # raw embeddings
        const2(1, H),      # emb_ln_g
        const2(1, H),      # emb_ln_b
        wspec(H, 3 * H),   # wqkv
        wspec(1, 3 * H),   # bqkv
        wspec(H, H),       # wo
        wspec(1, H),       # bo
        wspec(1, H),       # ln1_g
        wspec(1, H),       # ln1_b
        wspec(H, FF),      # w1
        wspec(1, FF),      # b1
        wspec(FF, H),      # w2
        wspec(1, H),       # b2
        wspec(1, H),       # ln2_g
        wspec(1, H),       # ln2_b
        pl.BlockSpec((1, 1, NUM_PAD), lambda b, l: (b, 0, 0)),  # numeric (padded)
        const2(NUM_PAD, H),     # w_num
        const2(1, H),           # b_num
        const2(2 * H, CLS_PAD), # w_cls
        const2(1, CLS_PAD),     # b_cls
    ]
    return pl.pallas_call(
        _fused_kernel,
        out_shape=jax.ShapeDtypeStruct((B, 1, CLS_PAD), jnp.float32),
        grid=(B, L),
        in_specs=in_specs,
        out_specs=pl.BlockSpec((1, 1, CLS_PAD), lambda b, l: (b, 0, 0)),
        scratch_shapes=[pltpu.VMEM((S, H), jnp.float32)],
        compiler_params=pltpu.CompilerParams(
            dimension_semantics=("parallel", "arbitrary")),
    )(addmask, x0,
      params["emb_ln_g"], params["emb_ln_b"],
      params["wqkv"], params["bqkv"], params["wo"], params["bo"],
      params["ln1_g"], params["ln1_b"], params["w1"], params["b1"],
      params["w2"], params["b2"], params["ln2_g"], params["ln2_b"],
      numeric_pad, params["w_num"], params["b_num"],
      params["w_cls"], params["b_cls"])


# ----------------------------- parameters -----------------------------

def init_params(key):
    keys = iter(jax.random.split(key, 64))

    def dense(*shape):
        return jax.random.normal(next(keys), shape, jnp.float32) * 0.02

    # numeric_embedding = nn.Linear(num_numeric_features, hidden); K padded with zeros
    w_num = jnp.zeros((NUM_PAD, H), jnp.float32).at[:NUM_NUMERIC].set(
        dense(NUM_NUMERIC, H))
    # classifier = nn.Linear(hidden * 2, 2); output padded to 128 lanes with zeros
    w_cls = jnp.zeros((2 * H, CLS_PAD), jnp.float32).at[:, :NUM_CLASSES].set(
        dense(2 * H, NUM_CLASSES))

    params = {
        "word_emb": dense(VOCAB, H),
        "pos_emb": dense(S, H),
        "type_emb": dense(2, H),
        "emb_ln_g": jnp.ones((1, H), jnp.float32),
        "emb_ln_b": jnp.zeros((1, H), jnp.float32),
        # per-layer weights stacked along a leading L axis (fused QKV)
        "wqkv": dense(L, H, 3 * H),
        "bqkv": jnp.zeros((L, 1, 3 * H), jnp.float32),
        "wo": dense(L, H, H),
        "bo": jnp.zeros((L, 1, H), jnp.float32),
        "ln1_g": jnp.ones((L, 1, H), jnp.float32),
        "ln1_b": jnp.zeros((L, 1, H), jnp.float32),
        "w1": dense(L, H, FF),
        "b1": jnp.zeros((L, 1, FF), jnp.float32),
        "w2": dense(L, FF, H),
        "b2": jnp.zeros((L, 1, H), jnp.float32),
        "ln2_g": jnp.ones((L, 1, H), jnp.float32),
        "ln2_b": jnp.zeros((L, 1, H), jnp.float32),
        "w_num": w_num,
        "b_num": jnp.zeros((1, H), jnp.float32),
        "w_cls": w_cls,
        "b_cls": jnp.zeros((1, CLS_PAD), jnp.float32),
    }
    return params


# ----------------------------- forward pass -----------------------------

def bert_with_numeric_forward(params, input_ids, attention_mask, numeric_features):
    Bq, Sq = input_ids.shape
    # embeddings: word + position + token_type(=0); LayerNorm is fused into the
    # kernel's l==0 step (no zero-residual tensor streamed through HBM).
    # TODO(synk): embedding gather stays in the XLA wrapper (data-dependent
    # row gather has no clean small-shape Pallas equivalent).
    x0 = (jnp.take(params["word_emb"], input_ids, axis=0)
          + params["pos_emb"][None, :Sq, :]
          + params["type_emb"][0][None, None, :])                   # (B, S, H)
    # additive attention mask computed ONCE per forward (shared by all layers)
    addmask = ((1.0 - attention_mask.astype(jnp.float32)) * -1e9
               ).reshape(Bq, 1, Sq)                                  # (B, 1, S)
    # numeric features zero-padded 9 -> 16 for clean lane tiling
    numeric_pad = jnp.pad(numeric_features,
                          ((0, 0), (0, NUM_PAD - NUM_NUMERIC))
                          ).reshape(Bq, 1, NUM_PAD)                  # (B, 1, 16)

    logits_full = fused_forward(params, x0, addmask, numeric_pad)    # (B, 1, 128)
    return logits_full[:, 0, :NUM_CLASSES]                           # (B, 2)


# ----------------------------- main -----------------------------

if __name__ == "__main__":
    key = jax.random.PRNGKey(0)
    k_param, k_ids, k_num = jax.random.split(key, 3)

    params = init_params(k_param)

    input_ids = jax.random.randint(k_ids, (B, S), 0, VOCAB, dtype=jnp.int32)
    attention_mask = jnp.ones((B, S), dtype=jnp.int32).at[1, S - 2:].set(0)
    numeric_features = jax.random.normal(k_num, (B, NUM_NUMERIC), jnp.float32)

    fwd = jax.jit(bert_with_numeric_forward)
    logits = fwd(params, input_ids, attention_mask, numeric_features)
    jax.block_until_ready(logits)

    assert logits.shape == (B, NUM_CLASSES) and logits.dtype == jnp.float32
    assert bool(jnp.all(jnp.isfinite(logits)))
    print("KERNEL_OK")
</pallas_src>

<mosaic_0001>
module attributes {stable_mosaic.version = 11 : i64} {
  func.func @_fused_kernel(%arg0: i32, %arg1: i32, %arg2: memref<1x1x8xf32, #tpu.memory_space<vmem>>, %arg3: memref<1x8x32xf32, #tpu.memory_space<vmem>>, %arg4: memref<1x32xf32, #tpu.memory_space<vmem>>, %arg5: memref<1x32xf32, #tpu.memory_space<vmem>>, %arg6: memref<1x32x96xf32, #tpu.memory_space<vmem>>, %arg7: memref<1x1x96xf32, #tpu.memory_space<vmem>>, %arg8: memref<1x32x32xf32, #tpu.memory_space<vmem>>, %arg9: memref<1x1x32xf32, #tpu.memory_space<vmem>>, %arg10: memref<1x1x32xf32, #tpu.memory_space<vmem>>, %arg11: memref<1x1x32xf32, #tpu.memory_space<vmem>>, %arg12: memref<1x32x64xf32, #tpu.memory_space<vmem>>, %arg13: memref<1x1x64xf32, #tpu.memory_space<vmem>>, %arg14: memref<1x64x32xf32, #tpu.memory_space<vmem>>, %arg15: memref<1x1x32xf32, #tpu.memory_space<vmem>>, %arg16: memref<1x1x32xf32, #tpu.memory_space<vmem>>, %arg17: memref<1x1x32xf32, #tpu.memory_space<vmem>>, %arg18: memref<1x1x16xf32, #tpu.memory_space<vmem>>, %arg19: memref<16x32xf32, #tpu.memory_space<vmem>>, %arg20: memref<1x32xf32, #tpu.memory_space<vmem>>, %arg21: memref<64x128xf32, #tpu.memory_space<vmem>>, %arg22: memref<1x128xf32, #tpu.memory_space<vmem>>, %arg23: memref<1x1x128xf32, #tpu.memory_space<vmem>>, %arg24: memref<8x32xf32, #tpu.memory_space<vmem>>) attributes {dimension_semantics = [#tpu.dimension_semantics<parallel>, #tpu.dimension_semantics<arbitrary>], iteration_bounds = array<i64: 2, 2>, scalar_prefetch = 0 : i64, scratch_operands = 1 : i64, tpu.core_type = #tpu.core_type<tc>, window_params = [{transform_indices = @transform_0, window_bounds = array<i64: 1, 1, 8>}, {transform_indices = @transform_1, window_bounds = array<i64: 1, 8, 32>}, {pipeline_mode = #tpu.pipeline_mode<synchronous>, transform_indices = @transform_2, window_bounds = array<i64: 1, 32>}, {pipeline_mode = #tpu.pipeline_mode<synchronous>, transform_indices = @transform_3, window_bounds = array<i64: 1, 32>}, {transform_indices = @transform_4, window_bounds = array<i64: 1, 32, 96>}, {transform_indices = @transform_5, window_bounds = array<i64: 1, 1, 96>}, {transform_indices = @transform_6, window_bounds = array<i64: 1, 32, 32>}, {transform_indices = @transform_7, window_bounds = array<i64: 1, 1, 32>}, {transform_indices = @transform_8, window_bounds = array<i64: 1, 1, 32>}, {transform_indices = @transform_9, window_bounds = array<i64: 1, 1, 32>}, {transform_indices = @transform_10, window_bounds = array<i64: 1, 32, 64>}, {transform_indices = @transform_11, window_bounds = array<i64: 1, 1, 64>}, {transform_indices = @transform_12, window_bounds = array<i64: 1, 64, 32>}, {transform_indices = @transform_13, window_bounds = array<i64: 1, 1, 32>}, {transform_indices = @transform_14, window_bounds = array<i64: 1, 1, 32>}, {transform_indices = @transform_15, window_bounds = array<i64: 1, 1, 32>}, {transform_indices = @transform_16, window_bounds = array<i64: 1, 1, 16>}, {pipeline_mode = #tpu.pipeline_mode<synchronous>, transform_indices = @transform_17, window_bounds = array<i64: 16, 32>}, {pipeline_mode = #tpu.pipeline_mode<synchronous>, transform_indices = @transform_18, window_bounds = array<i64: 1, 32>}, {pipeline_mode = #tpu.pipeline_mode<synchronous>, transform_indices = @transform_19, window_bounds = array<i64: 64, 128>}, {pipeline_mode = #tpu.pipeline_mode<synchronous>, transform_indices = @transform_20, window_bounds = array<i64: 1, 128>}, {transform_indices = @transform_21, window_bounds = array<i64: 1, 1, 128>}]} {
    %c0_i32 = arith.constant 0 : i32
    %0 = arith.cmpi eq, %arg1, %c0_i32 : i32
    %1 = arith.extui %0 : i1 to i32
    %c0_i32_0 = arith.constant 0 : i32
    %2 = arith.cmpi ne, %1, %c0_i32_0 : i32
    scf.if %2 {
      %c0_71 = arith.constant 0 : index
      %c0_72 = arith.constant 0 : index
      %c0_73 = arith.constant 0 : index
      %144 = vector.load %arg3[%c0_71, %c0_72, %c0_73] : memref<1x8x32xf32, #tpu.memory_space<vmem>>, vector<1x8x32xf32>
      %145 = vector.shape_cast %144 : vector<1x8x32xf32> to vector<8x32xf32>
      %c0_74 = arith.constant 0 : index
      %c0_75 = arith.constant 0 : index
      %146 = vector.load %arg4[%c0_74, %c0_75] : memref<1x32xf32, #tpu.memory_space<vmem>>, vector<1x32xf32>
      %c0_76 = arith.constant 0 : index
      %c0_77 = arith.constant 0 : index
      %147 = vector.load %arg5[%c0_76, %c0_77] : memref<1x32xf32, #tpu.memory_space<vmem>>, vector<1x32xf32>
      %cst_78 = arith.constant dense<0.000000e+00> : vector<8xf32>
      %148 = vector.multi_reduction <add>, %145, %cst_78 [1] : vector<8x32xf32> to vector<8xf32>
      %149 = vector.shape_cast %148 : vector<8xf32> to vector<8x1xf32>
      %cst_79 = arith.constant 3.200000e+01 : f32
      %150 = vector.broadcast %cst_79 : f32 to vector<8x1xf32>
      %151 = arith.divf %149, %150 : vector<8x1xf32>
      %152 = vector.broadcast %151 : vector<8x1xf32> to vector<8x32xf32>
      %153 = arith.subf %145, %152 : vector<8x32xf32>
      %154 = arith.mulf %153, %153 : vector<8x32xf32>
      %cst_80 = arith.constant dense<0.000000e+00> : vector<8xf32>
      %155 = vector.multi_reduction <add>, %154, %cst_80 [1] : vector<8x32xf32> to vector<8xf32>
      %156 = vector.shape_cast %155 : vector<8xf32> to vector<8x1xf32>
      %cst_81 = arith.constant 3.200000e+01 : f32
      %157 = vector.broadcast %cst_81 : f32 to vector<8x1xf32>
      %158 = arith.divf %156, %157 : vector<8x1xf32>
      %159 = vector.broadcast %151 : vector<8x1xf32> to vector<8x32xf32>
      %160 = arith.subf %145, %159 : vector<8x32xf32>
      %cst_82 = arith.constant 9.99999996E-13 : f32
      %161 = vector.broadcast %cst_82 : f32 to vector<8x1xf32>
      %162 = arith.addf %158, %161 : vector<8x1xf32>
      %163 = math.rsqrt %162 : vector<8x1xf32>
      %164 = vector.broadcast %163 : vector<8x1xf32> to vector<8x32xf32>
      %165 = arith.mulf %160, %164 : vector<8x32xf32>
      %166 = vector.broadcast %146 : vector<1x32xf32> to vector<8x32xf32>
      %167 = arith.mulf %165, %166 : vector<8x32xf32>
      %168 = vector.broadcast %147 : vector<1x32xf32> to vector<8x32xf32>
      %169 = arith.addf %167, %168 : vector<8x32xf32>
      %c0_83 = arith.constant 0 : index
      %c0_84 = arith.constant 0 : index
      %170 = vector.load %arg24[%c0_83, %c0_84] : memref<8x32xf32, #tpu.memory_space<vmem>>, vector<8x32xf32>
      tpu.vector_store %arg24[%c0_83, %c0_84], %169 {strides = array<i32>} : memref<8x32xf32, #tpu.memory_space<vmem>>, vector<8x32xf32>,
    } else {
    }
    %c0 = arith.constant 0 : index
    %c0_1 = arith.constant 0 : index
    %3 = vector.load %arg24[%c0, %c0_1] : memref<8x32xf32, #tpu.memory_space<vmem>>, vector<8x32xf32>
    %c0_2 = arith.constant 0 : index
    %c0_3 = arith.constant 0 : index
    %c0_4 = arith.constant 0 : index
    %4 = vector.load %arg2[%c0_2, %c0_3, %c0_4] : memref<1x1x8xf32, #tpu.memory_space<vmem>>, vector<1x1x8xf32>
    %5 = vector.shape_cast %4 : vector<1x1x8xf32> to vector<1x8xf32>
    %c0_5 = arith.constant 0 : index
    %c0_6 = arith.constant 0 : index
    %c0_7 = arith.constant 0 : index
    %6 = vector.load %arg6[%c0_5, %c0_6, %c0_7] : memref<1x32x96xf32, #tpu.memory_space<vmem>>, vector<1x32x96xf32>
    %7 = vector.shape_cast %6 : vector<1x32x96xf32> to vector<32x96xf32>
    %cst = arith.constant dense<0.000000e+00> : vector<8x96xf32>
    %8 = tpu.matmul %3, %7, %cst {dimension_numbers = #tpu.dot_dimension_numbers<[1], [0], [0], [1], [0, 0, 1, 1], [], []>} : vector<8x32xf32>, vector<32x96xf32>, vector<8x96xf32> -> vector<8x96xf32>
    %c0_8 = arith.constant 0 : index
    %c0_9 = arith.constant 0 : index
    %c0_10 = arith.constant 0 : index
    %9 = vector.load %arg7[%c0_8, %c0_9, %c0_10] : memref<1x1x96xf32, #tpu.memory_space<vmem>>, vector<1x1x96xf32>
    %10 = vector.shape_cast %9 : vector<1x1x96xf32> to vector<1x96xf32>
    %11 = vector.broadcast %10 : vector<1x96xf32> to vector<8x96xf32>
    %12 = arith.addf %8, %11 : vector<8x96xf32>
    %13 = vector.extract_strided_slice %12 {offsets = [0, 0], sizes = [8, 16], strides = [1, 1]} : vector<8x96xf32> to vector<8x16xf32>
    %14 = vector.extract_strided_slice %12 {offsets = [0, 32], sizes = [8, 16], strides = [1, 1]} : vector<8x96xf32> to vector<8x16xf32>
    %15 = vector.extract_strided_slice %12 {offsets = [0, 64], sizes = [8, 16], strides = [1, 1]} : vector<8x96xf32> to vector<8x16xf32>
    "tpu.trace_start"() <{level = 10 : i32, message = "qd,kd->qk"}> : () -> ()
    %cst_11 = arith.constant dense<0.000000e+00> : vector<8x8xf32>
    %16 = tpu.matmul %13, %14, %cst_11 {dimension_numbers = #tpu.dot_dimension_numbers<[1], [1], [0], [0], [0, 0, 1, 0], [], []>} : vector<8x16xf32>, vector<8x16xf32>, vector<8x8xf32> -> vector<8x8xf32>
    "tpu.trace_stop"() : () -> ()
    %cst_12 = arith.constant 2.500000e-01 : f32
    %17 = vector.broadcast %cst_12 : f32 to vector<8x8xf32>
    %18 = arith.mulf %16, %17 : vector<8x8xf32>
    %19 = vector.broadcast %5 : vector<1x8xf32> to vector<8x8xf32>
    %20 = arith.addf %18, %19 : vector<8x8xf32>
    %cst_13 = arith.constant dense<0xFF800000> : vector<8xf32>
    %21 = vector.multi_reduction <maximumf>, %20, %cst_13 [1] : vector<8x8xf32> to vector<8xf32>
    %22 = vector.shape_cast %21 : vector<8xf32> to vector<8x1xf32>
    %23 = vector.broadcast %22 : vector<8x1xf32> to vector<8x8xf32>
    %24 = arith.subf %20, %23 : vector<8x8xf32>
    %25 = math.exp %24 : vector<8x8xf32>
    %cst_14 = arith.constant dense<0.000000e+00> : vector<8xf32>
    %26 = vector.multi_reduction <add>, %25, %cst_14 [1] : vector<8x8xf32> to vector<8xf32>
    %27 = vector.shape_cast %26 : vector<8xf32> to vector<8x1xf32>
    %28 = tpu.reciprocal %27 {approx = true} : vector<8x1xf32> -> vector<8x1xf32>
    %29 = vector.broadcast %28 : vector<8x1xf32> to vector<8x8xf32>
    %30 = arith.mulf %25, %29 : vector<8x8xf32>
    %cst_15 = arith.constant dense<0.000000e+00> : vector<8x16xf32>
    %31 = tpu.matmul %30, %15, %cst_15 {dimension_numbers = #tpu.dot_dimension_numbers<[1], [0], [0], [1], [0, 0, 1, 1], [], []>} : vector<8x8xf32>, vector<8x16xf32>, vector<8x16xf32> -> vector<8x16xf32>
    %32 = vector.extract_strided_slice %12 {offsets = [0, 16], sizes = [8, 16], strides = [1, 1]} : vector<8x96xf32> to vector<8x16xf32>
    %33 = vector.extract_strided_slice %12 {offsets = [0, 48], sizes = [8, 16], strides = [1, 1]} : vector<8x96xf32> to vector<8x16xf32>
    %34 = vector.extract_strided_slice %12 {offsets = [0, 80], sizes = [8, 16], strides = [1, 1]} : vector<8x96xf32> to vector<8x16xf32>
    "tpu.trace_start"() <{level = 10 : i32, message = "qd,kd->qk"}> : () -> ()
    %cst_16 = arith.constant dense<0.000000e+00> : vector<8x8xf32>
    %35 = tpu.matmul %32, %33, %cst_16 {dimension_numbers = #tpu.dot_dimension_numbers<[1], [1], [0], [0], [0, 0, 1, 0], [], []>} : vector<8x16xf32>, vector<8x16xf32>, vector<8x8xf32> -> vector<8x8xf32>
    "tpu.trace_stop"() : () -> ()
    %cst_17 = arith.constant 2.500000e-01 : f32
    %36 = vector.broadcast %cst_17 : f32 to vector<8x8xf32>
    %37 = arith.mulf %35, %36 : vector<8x8xf32>
    %38 = vector.broadcast %5 : vector<1x8xf32> to vector<8x8xf32>
    %39 = arith.addf %37, %38 : vector<8x8xf32>
    %cst_18 = arith.constant dense<0xFF800000> : vector<8xf32>
    %40 = vector.multi_reduction <maximumf>, %39, %cst_18 [1] : vector<8x8xf32> to vector<8xf32>
    %41 = vector.shape_cast %40 : vector<8xf32> to vector<8x1xf32>
    %42 = vector.broadcast %41 : vector<8x1xf32> to vector<8x8xf32>
    %43 = arith.subf %39, %42 : vector<8x8xf32>
    %44 = math.exp %43 : vector<8x8xf32>
    %cst_19 = arith.constant dense<0.000000e+00> : vector<8xf32>
    %45 = vector.multi_reduction <add>, %44, %cst_19 [1] : vector<8x8xf32> to vector<8xf32>
    %46 = vector.shape_cast %45 : vector<8xf32> to vector<8x1xf32>
    %47 = tpu.reciprocal %46 {approx = true} : vector<8x1xf32> -> vector<8x1xf32>
    %48 = vector.broadcast %47 : vector<8x1xf32> to vector<8x8xf32>
    %49 = arith.mulf %44, %48 : vector<8x8xf32>
    %cst_20 = arith.constant dense<0.000000e+00> : vector<8x16xf32>
    %50 = tpu.matmul %49, %34, %cst_20 {dimension_numbers = #tpu.dot_dimension_numbers<[1], [0], [0], [1], [0, 0, 1, 1], [], []>} : vector<8x8xf32>, vector<8x16xf32>, vector<8x16xf32> -> vector<8x16xf32>
    %51 = tpu.concatenate %31, %50 in 1 : vector<8x16xf32>, vector<8x16xf32> -> vector<8x32xf32>
    %c0_21 = arith.constant 0 : index
    %c0_22 = arith.constant 0 : index
    %c0_23 = arith.constant 0 : index
    %52 = vector.load %arg8[%c0_21, %c0_22, %c0_23] : memref<1x32x32xf32, #tpu.memory_space<vmem>>, vector<1x32x32xf32>
    %53 = vector.shape_cast %52 : vector<1x32x32xf32> to vector<32x32xf32>
    %cst_24 = arith.constant dense<0.000000e+00> : vector<8x32xf32>
    %54 = tpu.matmul %51, %53, %cst_24 {dimension_numbers = #tpu.dot_dimension_numbers<[1], [0], [0], [1], [0, 0, 1, 1], [], []>} : vector<8x32xf32>, vector<32x32xf32>, vector<8x32xf32> -> vector<8x32xf32>
    %c0_25 = arith.constant 0 : index
    %c0_26 = arith.constant 0 : index
    %c0_27 = arith.constant 0 : index
    %55 = vector.load %arg9[%c0_25, %c0_26, %c0_27] : memref<1x1x32xf32, #tpu.memory_space<vmem>>, vector<1x1x32xf32>
    %56 = vector.shape_cast %55 : vector<1x1x32xf32> to vector<1x32xf32>
    %57 = vector.broadcast %56 : vector<1x32xf32> to vector<8x32xf32>
    %58 = arith.addf %54, %57 : vector<8x32xf32>
    %59 = arith.addf %58, %3 : vector<8x32xf32>
    %c0_28 = arith.constant 0 : index
    %c0_29 = arith.constant 0 : index
    %c0_30 = arith.constant 0 : index
    %60 = vector.load %arg10[%c0_28, %c0_29, %c0_30] : memref<1x1x32xf32, #tpu.memory_space<vmem>>, vector<1x1x32xf32>
    %61 = vector.shape_cast %60 : vector<1x1x32xf32> to vector<1x32xf32>
    %c0_31 = arith.constant 0 : index
    %c0_32 = arith.constant 0 : index
    %c0_33 = arith.constant 0 : index
    %62 = vector.load %arg11[%c0_31, %c0_32, %c0_33] : memref<1x1x32xf32, #tpu.memory_space<vmem>>, vector<1x1x32xf32>
    %63 = vector.shape_cast %62 : vector<1x1x32xf32> to vector<1x32xf32>
    %cst_34 = arith.constant dense<0.000000e+00> : vector<8xf32>
    %64 = vector.multi_reduction <add>, %59, %cst_34 [1] : vector<8x32xf32> to vector<8xf32>
    %65 = vector.shape_cast %64 : vector<8xf32> to vector<8x1xf32>
    %cst_35 = arith.constant 3.200000e+01 : f32
    %66 = vector.broadcast %cst_35 : f32 to vector<8x1xf32>
    %67 = arith.divf %65, %66 : vector<8x1xf32>
    %68 = vector.broadcast %67 : vector<8x1xf32> to vector<8x32xf32>
    %69 = arith.subf %59, %68 : vector<8x32xf32>
    %70 = arith.mulf %69, %69 : vector<8x32xf32>
    %cst_36 = arith.constant dense<0.000000e+00> : vector<8xf32>
    %71 = vector.multi_reduction <add>, %70, %cst_36 [1] : vector<8x32xf32> to vector<8xf32>
    %72 = vector.shape_cast %71 : vector<8xf32> to vector<8x1xf32>
    %cst_37 = arith.constant 3.200000e+01 : f32
    %73 = vector.broadcast %cst_37 : f32 to vector<8x1xf32>
    %74 = arith.divf %72, %73 : vector<8x1xf32>
    %75 = vector.broadcast %67 : vector<8x1xf32> to vector<8x32xf32>
    %76 = arith.subf %59, %75 : vector<8x32xf32>
    %cst_38 = arith.constant 9.99999996E-13 : f32
    %77 = vector.broadcast %cst_38 : f32 to vector<8x1xf32>
    %78 = arith.addf %74, %77 : vector<8x1xf32>
    %79 = math.rsqrt %78 : vector<8x1xf32>
    %80 = vector.broadcast %79 : vector<8x1xf32> to vector<8x32xf32>
    %81 = arith.mulf %76, %80 : vector<8x32xf32>
    %82 = vector.broadcast %61 : vector<1x32xf32> to vector<8x32xf32>
    %83 = arith.mulf %81, %82 : vector<8x32xf32>
    %84 = vector.broadcast %63 : vector<1x32xf32> to vector<8x32xf32>
    %85 = arith.addf %83, %84 : vector<8x32xf32>
    %c0_39 = arith.constant 0 : index
    %c0_40 = arith.constant 0 : index
    %c0_41 = arith.constant 0 : index
    %86 = vector.load %arg12[%c0_39, %c0_40, %c0_41] : memref<1x32x64xf32, #tpu.memory_space<vmem>>, vector<1x32x64xf32>
    %87 = vector.shape_cast %86 : vector<1x32x64xf32> to vector<32x64xf32>
    %cst_42 = arith.constant dense<0.000000e+00> : vector<8x64xf32>
    %88 = tpu.matmul %85, %87, %cst_42 {dimension_numbers = #tpu.dot_dimension_numbers<[1], [0], [0], [1], [0, 0, 1, 1], [], []>} : vector<8x32xf32>, vector<32x64xf32>, vector<8x64xf32> -> vector<8x64xf32>
    %c0_43 = arith.constant 0 : index
    %c0_44 = arith.constant 0 : index
    %c0_45 = arith.constant 0 : index
    %89 = vector.load %arg13[%c0_43, %c0_44, %c0_45] : memref<1x1x64xf32, #tpu.memory_space<vmem>>, vector<1x1x64xf32>
    %90 = vector.shape_cast %89 : vector<1x1x64xf32> to vector<1x64xf32>
    %91 = vector.broadcast %90 : vector<1x64xf32> to vector<8x64xf32>
    %92 = arith.addf %88, %91 : vector<8x64xf32>
    %93 = arith.mulf %92, %92 : vector<8x64xf32>
    %94 = arith.mulf %92, %93 : vector<8x64xf32>
    %cst_46 = arith.constant 4.471500e-02 : f32
    %95 = vector.broadcast %cst_46 : f32 to vector<8x64xf32>
    %96 = arith.mulf %95, %94 : vector<8x64xf32>
    %97 = arith.addf %92, %96 : vector<8x64xf32>
    %cst_47 = arith.constant 0.797884583 : f32
    %98 = vector.broadcast %cst_47 : f32 to vector<8x64xf32>
    %99 = arith.mulf %98, %97 : vector<8x64xf32>
    %100 = math.tanh %99 : vector<8x64xf32>
    %cst_48 = arith.constant 1.000000e+00 : f32
    %101 = vector.broadcast %cst_48 : f32 to vector<8x64xf32>
    %102 = arith.addf %101, %100 : vector<8x64xf32>
    %cst_49 = arith.constant 5.000000e-01 : f32
    %103 = vector.broadcast %cst_49 : f32 to vector<8x64xf32>
    %104 = arith.mulf %103, %102 : vector<8x64xf32>
    %105 = arith.mulf %92, %104 : vector<8x64xf32>
    %c0_50 = arith.constant 0 : index
    %c0_51 = arith.constant 0 : index
    %c0_52 = arith.constant 0 : index
    %106 = vector.load %arg14[%c0_50, %c0_51, %c0_52] : memref<1x64x32xf32, #tpu.memory_space<vmem>>, vector<1x64x32xf32>
    %107 = vector.shape_cast %106 : vector<1x64x32xf32> to vector<64x32xf32>
    %cst_53 = arith.constant dense<0.000000e+00> : vector<8x32xf32>
    %108 = tpu.matmul %105, %107, %cst_53 {dimension_numbers = #tpu.dot_dimension_numbers<[1], [0], [0], [1], [0, 0, 1, 1], [], []>} : vector<8x64xf32>, vector<64x32xf32>, vector<8x32xf32> -> vector<8x32xf32>
    %c0_54 = arith.constant 0 : index
    %c0_55 = arith.constant 0 : index
    %c0_56 = arith.constant 0 : index
    %109 = vector.load %arg15[%c0_54, %c0_55, %c0_56] : memref<1x1x32xf32, #tpu.memory_space<vmem>>, vector<1x1x32xf32>
    %110 = vector.shape_cast %109 : vector<1x1x32xf32> to vector<1x32xf32>
    %111 = vector.broadcast %110 : vector<1x32xf32> to vector<8x32xf32>
    %112 = arith.addf %108, %111 : vector<8x32xf32>
    %113 = arith.addf %112, %85 : vector<8x32xf32>
    %c0_57 = arith.constant 0 : index
    %c0_58 = arith.constant 0 : index
    %c0_59 = arith.constant 0 : index
    %114 = vector.load %arg16[%c0_57, %c0_58, %c0_59] : memref<1x1x32xf32, #tpu.memory_space<vmem>>, vector<1x1x32xf32>
    %115 = vector.shape_cast %114 : vector<1x1x32xf32> to vector<1x32xf32>
    %c0_60 = arith.constant 0 : index
    %c0_61 = arith.constant 0 : index
    %c0_62 = arith.constant 0 : index
    %116 = vector.load %arg17[%c0_60, %c0_61, %c0_62] : memref<1x1x32xf32, #tpu.memory_space<vmem>>, vector<1x1x32xf32>
    %117 = vector.shape_cast %116 : vector<1x1x32xf32> to vector<1x32xf32>
    %cst_63 = arith.constant dense<0.000000e+00> : vector<8xf32>
    %118 = vector.multi_reduction <add>, %113, %cst_63 [1] : vector<8x32xf32> to vector<8xf32>
    %119 = vector.shape_cast %118 : vector<8xf32> to vector<8x1xf32>
    %cst_64 = arith.constant 3.200000e+01 : f32
    %120 = vector.broadcast %cst_64 : f32 to vector<8x1xf32>
    %121 = arith.divf %119, %120 : vector<8x1xf32>
    %122 = vector.broadcast %121 : vector<8x1xf32> to vector<8x32xf32>
    %123 = arith.subf %113, %122 : vector<8x32xf32>
    %124 = arith.mulf %123, %123 : vector<8x32xf32>
    %cst_65 = arith.constant dense<0.000000e+00> : vector<8xf32>
    %125 = vector.multi_reduction <add>, %124, %cst_65 [1] : vector<8x32xf32> to vector<8xf32>
    %126 = vector.shape_cast %125 : vector<8xf32> to vector<8x1xf32>
    %cst_66 = arith.constant 3.200000e+01 : f32
    %127 = vector.broadcast %cst_66 : f32 to vector<8x1xf32>
    %128 = arith.divf %126, %127 : vector<8x1xf32>
    %129 = vector.broadcast %121 : vector<8x1xf32> to vector<8x32xf32>
    %130 = arith.subf %113, %129 : vector<8x32xf32>
    %cst_67 = arith.constant 9.99999996E-13 : f32
    %131 = vector.broadcast %cst_67 : f32 to vector<8x1xf32>
    %132 = arith.addf %128, %131 : vector<8x1xf32>
    %133 = math.rsqrt %132 : vector<8x1xf32>
    %134 = vector.broadcast %133 : vector<8x1xf32> to vector<8x32xf32>
    %135 = arith.mulf %130, %134 : vector<8x32xf32>
    %136 = vector.broadcast %115 : vector<1x32xf32> to vector<8x32xf32>
    %137 = arith.mulf %135, %136 : vector<8x32xf32>
    %138 = vector.broadcast %117 : vector<1x32xf32> to vector<8x32xf32>
    %139 = arith.addf %137, %138 : vector<8x32xf32>
    %c0_68 = arith.constant 0 : index
    %c0_69 = arith.constant 0 : index
    %140 = vector.load %arg24[%c0_68, %c0_69] : memref<8x32xf32, #tpu.memory_space<vmem>>, vector<8x32xf32>
    tpu.vector_store %arg24[%c0_68, %c0_69], %139 {strides = array<i32>} : memref<8x32xf32, #tpu.memory_space<vmem>>, vector<8x32xf32>,
    %c1_i32 = arith.constant 1 : i32
    %141 = arith.cmpi eq, %arg1, %c1_i32 : i32
    %142 = arith.extui %141 : i1 to i32
    %c0_i32_70 = arith.constant 0 : i32
    %143 = arith.cmpi ne, %142, %c0_i32_70 : i32
    scf.if %143 {
      %144 = vector.extract_strided_slice %139 {offsets = [0, 0], sizes = [1, 32], strides = [1, 1]} : vector<8x32xf32> to vector<1x32xf32>
      %c0_71 = arith.constant 0 : index
      %c0_72 = arith.constant 0 : index
      %c0_73 = arith.constant 0 : index
      %145 = vector.load %arg18[%c0_71, %c0_72, %c0_73] : memref<1x1x16xf32, #tpu.memory_space<vmem>>, vector<1x1x16xf32>
      %146 = vector.shape_cast %145 : vector<1x1x16xf32> to vector<1x16xf32>
      %c0_74 = arith.constant 0 : index
      %c0_75 = arith.constant 0 : index
      %147 = vector.load %arg19[%c0_74, %c0_75] : memref<16x32xf32, #tpu.memory_space<vmem>>, vector<16x32xf32>
      %cst_76 = arith.constant dense<0.000000e+00> : vector<1x32xf32>
      %148 = tpu.matmul %146, %147, %cst_76 {dimension_numbers = #tpu.dot_dimension_numbers<[1], [0], [0], [1], [0, 0, 1, 1], [], []>} : vector<1x16xf32>, vector<16x32xf32>, vector<1x32xf32> -> vector<1x32xf32>
      %c0_77 = arith.constant 0 : index
      %c0_78 = arith.constant 0 : index
      %149 = vector.load %arg20[%c0_77, %c0_78] : memref<1x32xf32, #tpu.memory_space<vmem>>, vector<1x32xf32>
      %150 = arith.addf %148, %149 : vector<1x32xf32>
      %c0_79 = arith.constant 0 : index
      %c0_80 = arith.constant 0 : index
      %151 = vector.load %arg21[%c0_79, %c0_80] : memref<64x128xf32, #tpu.memory_space<vmem>>, vector<32x128xf32>
      %cst_81 = arith.constant dense<0.000000e+00> : vector<1x128xf32>
      %152 = tpu.matmul %144, %151, %cst_81 {dimension_numbers = #tpu.dot_dimension_numbers<[1], [0], [0], [1], [0, 0, 1, 1], [], []>} : vector<1x32xf32>, vector<32x128xf32>, vector<1x128xf32> -> vector<1x128xf32>
      %c32 = arith.constant 32 : index
      %c0_82 = arith.constant 0 : index
      %153 = vector.load %arg21[%c32, %c0_82] : memref<64x128xf32, #tpu.memory_space<vmem>>, vector<32x128xf32>
      %cst_83 = arith.constant dense<0.000000e+00> : vector<1x128xf32>
      %154 = tpu.matmul %150, %153, %cst_83 {dimension_numbers = #tpu.dot_dimension_numbers<[1], [0], [0], [1], [0, 0, 1, 1], [], []>} : vector<1x32xf32>, vector<32x128xf32>, vector<1x128xf32> -> vector<1x128xf32>
      %155 = arith.addf %152, %154 : vector<1x128xf32>
      %c0_84 = arith.constant 0 : index
      %c0_85 = arith.constant 0 : index
      %156 = vector.load %arg22[%c0_84, %c0_85] : memref<1x128xf32, #tpu.memory_space<vmem>>, vector<1x128xf32>
      %157 = arith.addf %155, %156 : vector<1x128xf32>
      %c0_86 = arith.constant 0 : index
      %c0_87 = arith.constant 0 : index
      %c0_88 = arith.constant 0 : index
      %158 = vector.load %arg23[%c0_86, %c0_87, %c0_88] : memref<1x1x128xf32, #tpu.memory_space<vmem>>, vector<1x1x128xf32>
      %159 = vector.shape_cast %158 : vector<1x1x128xf32> to vector<1x128xf32>
      %160 = vector.shape_cast %157 : vector<1x128xf32> to vector<1x1x128xf32>
      tpu.vector_store %arg23[%c0_86, %c0_87, %c0_88], %160 {strides = array<i32>} : memref<1x1x128xf32, #tpu.memory_space<vmem>>, vector<1x1x128xf32>,
    } else {
    }
    return
  }
  func.func @transform_0(%arg0: i32, %arg1: i32) -> (i32, i32, i32) {
    %c0_i32 = arith.constant 0 : i32
    %c0_i32_0 = arith.constant 0 : i32
    %c0_i32_1 = arith.constant 0 : i32
    return %arg0, %c0_i32, %c0_i32_0 : i32, i32, i32
  }
  func.func @transform_1(%arg0: i32, %arg1: i32) -> (i32, i32, i32) {
    %c0_i32 = arith.constant 0 : i32
    %c0_i32_0 = arith.constant 0 : i32
    %c0_i32_1 = arith.constant 0 : i32
    return %arg0, %c0_i32, %c0_i32_0 : i32, i32, i32
  }
  func.func @transform_2(%arg0: i32, %arg1: i32) -> (i32, i32) {
    %c0_i32 = arith.constant 0 : i32
    %c0_i32_0 = arith.constant 0 : i32
    %c0_i32_1 = arith.constant 0 : i32
    return %c0_i32, %c0_i32_0 : i32, i32
  }
  func.func @transform_3(%arg0: i32, %arg1: i32) -> (i32, i32) {
    %c0_i32 = arith.constant 0 : i32
    %c0_i32_0 = arith.constant 0 : i32
    %c0_i32_1 = arith.constant 0 : i32
    return %c0_i32, %c0_i32_0 : i32, i32
  }
  func.func @transform_4(%arg0: i32, %arg1: i32) -> (i32, i32, i32) {
    %c0_i32 = arith.constant 0 : i32
    %c0_i32_0 = arith.constant 0 : i32
    %c0_i32_1 = arith.constant 0 : i32
    return %arg1, %c0_i32, %c0_i32_0 : i32, i32, i32
  }
  func.func @transform_5(%arg0: i32, %arg1: i32) -> (i32, i32, i32) {
    %c0_i32 = arith.constant 0 : i32
    %c0_i32_0 = arith.constant 0 : i32
    %c0_i32_1 = arith.constant 0 : i32
    return %arg1, %c0_i32, %c0_i32_0 : i32, i32, i32
  }
  func.func @transform_6(%arg0: i32, %arg1: i32) -> (i32, i32, i32) {
    %c0_i32 = arith.constant 0 : i32
    %c0_i32_0 = arith.constant 0 : i32
    %c0_i32_1 = arith.constant 0 : i32
    return %arg1, %c0_i32, %c0_i32_0 : i32, i32, i32
  }
  func.func @transform_7(%arg0: i32, %arg1: i32) -> (i32, i32, i32) {
    %c0_i32 = arith.constant 0 : i32
    %c0_i32_0 = arith.constant 0 : i32
    %c0_i32_1 = arith.constant 0 : i32
    return %arg1, %c0_i32, %c0_i32_0 : i32, i32, i32
  }
  func.func @transform_8(%arg0: i32, %arg1: i32) -> (i32, i32, i32) {
    %c0_i32 = arith.constant 0 : i32
    %c0_i32_0 = arith.constant 0 : i32
    %c0_i32_1 = arith.constant 0 : i32
    return %arg1, %c0_i32, %c0_i32_0 : i32, i32, i32
  }
  func.func @transform_9(%arg0: i32, %arg1: i32) -> (i32, i32, i32) {
    %c0_i32 = arith.constant 0 : i32
    %c0_i32_0 = arith.constant 0 : i32
    %c0_i32_1 = arith.constant 0 : i32
    return %arg1, %c0_i32, %c0_i32_0 : i32, i32, i32
  }
  func.func @transform_10(%arg0: i32, %arg1: i32) -> (i32, i32, i32) {
    %c0_i32 = arith.constant 0 : i32
    %c0_i32_0 = arith.constant 0 : i32
    %c0_i32_1 = arith.constant 0 : i32
    return %arg1, %c0_i32, %c0_i32_0 : i32, i32, i32
  }
  func.func @transform_11(%arg0: i32, %arg1: i32) -> (i32, i32, i32) {
    %c0_i32 = arith.constant 0 : i32
    %c0_i32_0 = arith.constant 0 : i32
    %c0_i32_1 = arith.constant 0 : i32
    return %arg1, %c0_i32, %c0_i32_0 : i32, i32, i32
  }
  func.func @transform_12(%arg0: i32, %arg1: i32) -> (i32, i32, i32) {
    %c0_i32 = arith.constant 0 : i32
    %c0_i32_0 = arith.constant 0 : i32
    %c0_i32_1 = arith.constant 0 : i32
    return %arg1, %c0_i32, %c0_i32_0 : i32, i32, i32
  }
  func.func @transform_13(%arg0: i32, %arg1: i32) -> (i32, i32, i32) {
    %c0_i32 = arith.constant 0 : i32
    %c0_i32_0 = arith.constant 0 : i32
    %c0_i32_1 = arith.constant 0 : i32
    return %arg1, %c0_i32, %c0_i32_0 : i32, i32, i32
  }
  func.func @transform_14(%arg0: i32, %arg1: i32) -> (i32, i32, i32) {
    %c0_i32 = arith.constant 0 : i32
    %c0_i32_0 = arith.constant 0 : i32
    %c0_i32_1 = arith.constant 0 : i32
    return %arg1, %c0_i32, %c0_i32_0 : i32, i32, i32
  }
  func.func @transform_15(%arg0: i32, %arg1: i32) -> (i32, i32, i32) {
    %c0_i32 = arith.constant 0 : i32
    %c0_i32_0 = arith.constant 0 : i32
    %c0_i32_1 = arith.constant 0 : i32
    return %arg1, %c0_i32, %c0_i32_0 : i32, i32, i32
  }
  func.func @transform_16(%arg0: i32, %arg1: i32) -> (i32, i32, i32) {
    %c0_i32 = arith.constant 0 : i32
    %c0_i32_0 = arith.constant 0 : i32
    %c0_i32_1 = arith.constant 0 : i32
    return %arg0, %c0_i32, %c0_i32_0 : i32, i32, i32
  }
  func.func @transform_17(%arg0: i32, %arg1: i32) -> (i32, i32) {
    %c0_i32 = arith.constant 0 : i32
    %c0_i32_0 = arith.constant 0 : i32
    %c0_i32_1 = arith.constant 0 : i32
    return %c0_i32, %c0_i32_0 : i32, i32
  }
  func.func @transform_18(%arg0: i32, %arg1: i32) -> (i32, i32) {
    %c0_i32 = arith.constant 0 : i32
    %c0_i32_0 = arith.constant 0 : i32
    %c0_i32_1 = arith.constant 0 : i32
    return %c0_i32, %c0_i32_0 : i32, i32
  }
  func.func @transform_19(%arg0: i32, %arg1: i32) -> (i32, i32) {
    %c0_i32 = arith.constant 0 : i32
    %c0_i32_0 = arith.constant 0 : i32
    %c0_i32_1 = arith.constant 0 : i32
    return %c0_i32, %c0_i32_0 : i32, i32
  }
  func.func @transform_20(%arg0: i32, %arg1: i32) -> (i32, i32) {
    %c0_i32 = arith.constant 0 : i32
    %c0_i32_0 = arith.constant 0 : i32
    %c0_i32_1 = arith.constant 0 : i32
    return %c0_i32, %c0_i32_0 : i32, i32
  }
  func.func @transform_21(%arg0: i32, %arg1: i32) -> (i32, i32, i32) {
    %c0_i32 = arith.constant 0 : i32
    %c0_i32_0 = arith.constant 0 : i32
    %c0_i32_1 = arith.constant 0 : i32
    return %arg0, %c0_i32, %c0_i32_0 : i32, i32, i32
  }
}

</mosaic_0001>

<llo_original>
// kernel: bert_with_numeric_forward.1
$region0: #{bert_with_numeric_forward.1}
  #allocation0 [shape = 'u32[]', space=smem, size = 0x4, offset = 0x4, fixed_abs, tag = 'smem constant byte address 0x4 - core index']
  #allocation1 [shape = 'u32[144,128]{1,0:T(1,128)}', space=vmem, size = 0x12000, scoped, tag = 'internal scratch']
  #allocation2 [shape = 'f32[8,32]{1,0:T(8,128)}', space=vmem, size = 0x1000, scoped, tag = 'scratch operand']
  %s0 = inlined_call_operand.vmem [shape: f32[2,1,8], index: 0, kind: input, shape index: {}]
  %s1 = inlined_call_operand.vmem [shape: f32[2,8,32], index: 1, kind: input, shape index: {}]
  %s2 = inlined_call_operand.vmem [shape: f32[1,32], index: 2, kind: input, shape index: {}]
  %s3 = inlined_call_operand.vmem [shape: f32[1,32], index: 3, kind: input, shape index: {}]
  %s4 = inlined_call_operand.vmem [shape: f32[2,32,96], index: 4, kind: input, shape index: {}]
  %s5 = inlined_call_operand.vmem [shape: f32[2,1,96], index: 5, kind: input, shape index: {}]
  %s6 = inlined_call_operand.vmem [shape: f32[2,32,32], index: 6, kind: input, shape index: {}]
  %s7 = inlined_call_operand.vmem [shape: f32[2,1,32], index: 7, kind: input, shape index: {}]
  %s8 = inlined_call_operand.vmem [shape: f32[2,1,32], index: 8, kind: input, shape index: {}]
  %s9 = inlined_call_operand.vmem [shape: f32[2,1,32], index: 9, kind: input, shape index: {}]
  %s10 = inlined_call_operand.vmem [shape: f32[2,32,64], index: 10, kind: input, shape index: {}]
  %s11 = inlined_call_operand.vmem [shape: f32[2,1,64], index: 11, kind: input, shape index: {}]
  %s12 = inlined_call_operand.vmem [shape: f32[2,64,32], index: 12, kind: input, shape index: {}]
  %s13 = inlined_call_operand.vmem [shape: f32[2,1,32], index: 13, kind: input, shape index: {}]
  %s14 = inlined_call_operand.vmem [shape: f32[2,1,32], index: 14, kind: input, shape index: {}]
  %s15 = inlined_call_operand.vmem [shape: f32[2,1,32], index: 15, kind: input, shape index: {}]
  %s16 = inlined_call_operand.vmem [shape: f32[2,1,16], index: 16, kind: input, shape index: {}]
  %s17 = inlined_call_operand.vmem [shape: f32[16,32], index: 17, kind: input, shape index: {}]
  %s18 = inlined_call_operand.vmem [shape: f32[1,32], index: 18, kind: input, shape index: {}]
  %s19 = inlined_call_operand.vmem [shape: f32[64,128], index: 19, kind: input, shape index: {}]
  %s20 = inlined_call_operand.vmem [shape: f32[1,128], index: 20, kind: input, shape index: {}]
  %s21 = inlined_call_operand.hbm [shape: f32[2,1,128], index: 21, kind: output, shape index: {}]
  %s22 = sld [smem:[#allocation0]]
  $region125: #{bert_with_numeric_forward.1} parent=0
    _
  %s24 = ssub.s32 1, %s22
  %s25 = scalar_select 0, %s24, %s22
  $region1: #{bert_with_numeric_forward.1} parent=0
    #allocation3 [shape = 'u8[1024]{0}', space=vmem, size = 0x400, scoped, tag = 'output window, operand 0']
    #allocation4 [shape = 's32[2]{0}', space=sflag, size = 0x8, scoped, tag = 'scoped memory for bert_with_numeric_forward.1']
    %26 = vsyncpa [#allocation4], 0
    %s27 = scalar_lea.sflag [#allocation4], 1
    %28 = vsyncpa %s27, 0
    loop: start=0, step=1, limit=6
    $region2: #{bert_with_numeric_forward.1} parent=1 // loop_pre_header
      _
    $region3: #{bert_with_numeric_forward.1} parent=1 // loop_header
      %s30 = sphi 0, %s34
      %p31 = scmp.ge.s32.totalorder %s30, 6
      %s37 = sphi 0, %s49
      %s38 = sphi 0, %s45
      %s39 = sphi 0, %s37
      %s40 = sphi 0, %s38
      %s41 = sphi 0, %s39
      %s42 = sphi 0, %s40
      %s52 = sphi 0, %s54
      %s55 = sphi 0, %s52
      %s56 = sphi 0, %s55
      %s72 = sphi 0, %s56
      %s78 = sphi 0, %s80
      %s81 = sphi 0, %s78
      %s82 = sphi 0, %s81
      %s98 = sphi 0, %s82
      %s102 = sphi 0, %s102
      %s104 = sphi 0, %s102
      %s105 = sphi 0, %s104
      %s119 = sphi 0, %s105
      %s123 = sphi 0, %s123
      %s125 = sphi 0, %s123
      %s126 = sphi 0, %s125
      %s140 = sphi 0, %s126
      %s146 = sphi 0, %s148
      %s149 = sphi 0, %s146
      %s150 = sphi 0, %s149
      %s166 = sphi 0, %s150
      %s172 = sphi 0, %s174
      %s175 = sphi 0, %s172
      %s176 = sphi 0, %s175
      %s192 = sphi 0, %s176
      %s198 = sphi 0, %s200
      %s201 = sphi 0, %s198
      %s202 = sphi 0, %s201
      %s218 = sphi 0, %s202
      %s224 = sphi 0, %s226
      %s227 = sphi 0, %s224
      %s228 = sphi 0, %s227
      %s244 = sphi 0, %s228
      %s250 = sphi 0, %s252
      %s253 = sphi 0, %s250
      %s254 = sphi 0, %s253
      %s270 = sphi 0, %s254
      %s276 = sphi 0, %s278
      %s279 = sphi 0, %s276
      %s280 = sphi 0, %s279
      %s296 = sphi 0, %s280
      %s302 = sphi 0, %s304
      %s305 = sphi 0, %s302
      %s306 = sphi 0, %s305
      %s322 = sphi 0, %s306
      %s328 = sphi 0, %s330
      %s331 = sphi 0, %s328
      %s332 = sphi 0, %s331
      %s348 = sphi 0, %s332
      %s354 = sphi 0, %s356
      %s357 = sphi 0, %s354
      %s358 = sphi 0, %s357
      %s374 = sphi 0, %s358
      %s380 = sphi 0, %s382
      %s383 = sphi 0, %s380
      %s384 = sphi 0, %s383
      %s400 = sphi 0, %s384
      %s406 = sphi 0, %s408
      %s409 = sphi 0, %s406
      %s410 = sphi 0, %s409
      %s426 = sphi 0, %s410
      %s432 = sphi 0, %s434
      %s435 = sphi 0, %s432
      %s436 = sphi 0, %s435
      %s452 = sphi 0, %s436
      %s458 = sphi 0, %s460
      %s461 = sphi 0, %s458
      %s462 = sphi 0, %s461
      %s478 = sphi 0, %s462
      %s482 = sphi 0, %s482
      %s484 = sphi 0, %s482
      %s485 = sphi 0, %s484
      %s499 = sphi 0, %s485
      %s503 = sphi 0, %s503
      %s505 = sphi 0, %s503
      %s506 = sphi 0, %s505
      %s520 = sphi 0, %s506
      %s524 = sphi 0, %s524
      %s526 = sphi 0, %s524
      %s527 = sphi 0, %s526
      %s541 = sphi 0, %s527
      %s545 = sphi 0, %s545
      %s547 = sphi 0, %s545
      %s548 = sphi 0, %s547
      %s562 = sphi 0, %s548
      %s568 = sphi 0, %s570
      %s571 = sphi 0, %s568
      %s572 = sphi 0, %s571
      %s588 = sphi 0, %s572
    $region4: #{bert_with_numeric_forward.1} parent=1 // loop_header_branch
      %33 = sbr.rel (%p31) target = $region8
    $region5: #{bert_with_numeric_forward.1} parent=1 // loop_body
      %s35 = ssub.s32 %s30, 1
      %s36 = ssub.s32 %s30, 2
      %s43 = sadd.s32 1, %s38
      %p44 = scmp.ge.s32.totalorder %s43, 2
      %s45 = scalar_select %p44, 0, %s43
      %s46 = sadd.s32 1, %s37
      %s47 = scalar_select %p44, %s46, %s37
      %p48 = scmp.ge.s32.totalorder %s47, 2
      %s49 = scalar_select %p48, 0, %s47
      %s50 = ssub.s32 %s37, %s49
      %p51 = scmp.eq.s32.totalorder %s50, 0
      %s53 = sadd.s32 %s52, 1
      %s54 = scalar_select %p51, %s52, %s53
      %p57 = pneg %p51
      %p58 = scmp.eq.s32.totalorder %s30, 3
      %p59 = por %p57, %p58
      %p60 = scmp.ne.s32.totalorder %s52, %s55
      %p61 = scmp.eq.s32.totalorder %s30, 0
      %p62 = por %p60, %p61
      %p63 = scmp.ne.s32.totalorder %s52, %s55
      %p64 = scmp.eq.s32.totalorder %s35, 3
      %p65 = por %p63, %p64
      %p66 = scmp.ne.s32.totalorder %s55, %s56
      %p67 = scmp.eq.s32.totalorder %s35, 0
      %p68 = por %p66, %p67
      %p69 = scmp.ne.s32.totalorder %s55, %s56
      %p70 = scmp.eq.s32.totalorder %s36, 3
      %p71 = por %p69, %p70
      %p73 = scmp.ne.s32.totalorder %s56, %s72
      %p74 = scmp.eq.s32.totalorder %s36, 0
      %p75 = por %p73, %p74
      %s76 = ssub.s32 %s37, %s49
      %p77 = scmp.eq.s32.totalorder %s76, 0
      %s79 = sadd.s32 %s78, 1
      %s80 = scalar_select %p77, %s78, %s79
      %p83 = pneg %p77
      %p84 = scmp.eq.s32.totalorder %s30, 3
      %p85 = por %p83, %p84
      %p86 = scmp.ne.s32.totalorder %s78, %s81
      %p87 = scmp.eq.s32.totalorder %s30, 0
      %p88 = por %p86, %p87
      %p89 = scmp.ne.s32.totalorder %s78, %s81
      %p90 = scmp.eq.s32.totalorder %s35, 3
      %p91 = por %p89, %p90
      %p92 = scmp.ne.s32.totalorder %s81, %s82
      %p93 = scmp.eq.s32.totalorder %s35, 0
      %p94 = por %p92, %p93
      %p95 = scmp.ne.s32.totalorder %s81, %s82
      %p96 = scmp.eq.s32.totalorder %s36, 3
      %p97 = por %p95, %p96
      %p99 = scmp.ne.s32.totalorder %s82, %s98
      %p100 = scmp.eq.s32.totalorder %s36, 0
      %p101 = por %p99, %p100
      %s103 = sadd.s32 %s102, 1
      %p106 = scmp.eq.s32.totalorder %s30, 3
      %p107 = scmp.ne.s32.totalorder %s102, %s104
      %p108 = scmp.eq.s32.totalorder %s30, 0
      %p109 = por %p107, %p108
      %p110 = scmp.ne.s32.totalorder %s102, %s104
      %p111 = scmp.eq.s32.totalorder %s35, 3
      %p112 = por %p110, %p111
      %p113 = scmp.ne.s32.totalorder %s104, %s105
      %p114 = scmp.eq.s32.totalorder %s35, 0
      %p115 = por %p113, %p114
      %p116 = scmp.ne.s32.totalorder %s104, %s105
      %p117 = scmp.eq.s32.totalorder %s36, 3
      %p118 = por %p116, %p117
      %p120 = scmp.ne.s32.totalorder %s105, %s119
      %p121 = scmp.eq.s32.totalorder %s36, 0
      %p122 = por %p120, %p121
      %s124 = sadd.s32 %s123, 1
      %p127 = scmp.eq.s32.totalorder %s30, 3
      %p128 = scmp.ne.s32.totalorder %s123, %s125
      %p129 = scmp.eq.s32.totalorder %s30, 0
      %p130 = por %p128, %p129
      %p131 = scmp.ne.s32.totalorder %s123, %s125
      %p132 = scmp.eq.s32.totalorder %s35, 3
      %p133 = por %p131, %p132
      %p134 = scmp.ne.s32.totalorder %s125, %s126
      %p135 = scmp.eq.s32.totalorder %s35, 0
      %p136 = por %p134, %p135
      %p137 = scmp.ne.s32.totalorder %s125, %s126
      %p138 = scmp.eq.s32.totalorder %s36, 3
      %p139 = por %p137, %p138
      %p141 = scmp.ne.s32.totalorder %s126, %s140
      %p142 = scmp.eq.s32.totalorder %s36, 0
      %p143 = por %p141, %p142
      %s144 = ssub.s32 %s38, %s45
      %p145 = scmp.eq.s32.totalorder %s144, 0
      %s147 = sadd.s32 %s146, 1
      %s148 = scalar_select %p145, %s146, %s147
      %p151 = pneg %p145
      %p152 = scmp.eq.s32.totalorder %s30, 3
      %p153 = por %p151, %p152
      %p154 = scmp.ne.s32.totalorder %s146, %s149
      %p155 = scmp.eq.s32.totalorder %s30, 0
      %p156 = por %p154, %p155
      %p157 = scmp.ne.s32.totalorder %s146, %s149
      %p158 = scmp.eq.s32.totalorder %s35, 3
      %p159 = por %p157, %p158
      %p160 = scmp.ne.s32.totalorder %s149, %s150
      %p161 = scmp.eq.s32.totalorder %s35, 0
      %p162 = por %p160, %p161
      %p163 = scmp.ne.s32.totalorder %s149, %s150
      %p164 = scmp.eq.s32.totalorder %s36, 3
      %p165 = por %p163, %p164
      %p167 = scmp.ne.s32.totalorder %s150, %s166
      %p168 = scmp.eq.s32.totalorder %s36, 0
      %p169 = por %p167, %p168
      %s170 = ssub.s32 %s38, %s45
      %p171 = scmp.eq.s32.totalorder %s170, 0
      %s173 = sadd.s32 %s172, 1
      %s174 = scalar_select %p171, %s172, %s173
      %p177 = pneg %p171
      %p178 = scmp.eq.s32.totalorder %s30, 3
      %p179 = por %p177, %p178
      %p180 = scmp.ne.s32.totalorder %s172, %s175
      %p181 = scmp.eq.s32.totalorder %s30, 0
      %p182 = por %p180, %p181
      %p183 = scmp.ne.s32.totalorder %s172, %s175
      %p184 = scmp.eq.s32.totalorder %s35, 3
      %p185 = por %p183, %p184
      %p186 = scmp.ne.s32.totalorder %s175, %s176
      %p187 = scmp.eq.s32.totalorder %s35, 0
      %p188 = por %p186, %p187
      %p189 = scmp.ne.s32.totalorder %s175, %s176
      %p190 = scmp.eq.s32.totalorder %s36, 3
      %p191 = por %p189, %p190
      %p193 = scmp.ne.s32.totalorder %s176, %s192
      %p194 = scmp.eq.s32.totalorder %s36, 0
      %p195 = por %p193, %p194
      %s196 = ssub.s32 %s38, %s45
      %p197 = scmp.eq.s32.totalorder %s196, 0
      %s199 = sadd.s32 %s198, 1
      %s200 = scalar_select %p197, %s198, %s199
      %p203 = pneg %p197
      %p204 = scmp.eq.s32.totalorder %s30, 3
      %p205 = por %p203, %p204
      %p206 = scmp.ne.s32.totalorder %s198, %s201
      %p207 = scmp.eq.s32.totalorder %s30, 0
      %p208 = por %p206, %p207
      %p209 = scmp.ne.s32.totalorder %s198, %s201
      %p210 = scmp.eq.s32.totalorder %s35, 3
      %p211 = por %p209, %p210
      %p212 = scmp.ne.s32.totalorder %s201, %s202
      %p213 = scmp.eq.s32.totalorder %s35, 0
      %p214 = por %p212, %p213
      %p215 = scmp.ne.s32.totalorder %s201, %s202
      %p216 = scmp.eq.s32.totalorder %s36, 3
      %p217 = por %p215, %p216
      %p219 = scmp.ne.s32.totalorder %s202, %s218
      %p220 = scmp.eq.s32.totalorder %s36, 0
      %p221 = por %p219, %p220
      %s222 = ssub.s32 %s38, %s45
      %p223 = scmp.eq.s32.totalorder %s222, 0
      %s225 = sadd.s32 %s224, 1
      %s226 = scalar_select %p223, %s224, %s225
      %p229 = pneg %p223
      %p230 = scmp.eq.s32.totalorder %s30, 3
      %p231 = por %p229, %p230
      %p232 = scmp.ne.s32.totalorder %s224, %s227
      %p233 = scmp.eq.s32.totalorder %s30, 0
      %p234 = por %p232, %p233
      %p235 = scmp.ne.s32.totalorder %s224, %s227
      %p236 = scmp.eq.s32.totalorder %s35, 3
      %p237 = por %p235, %p236
      %p238 = scmp.ne.s32.totalorder %s227, %s228
      %p239 = scmp.eq.s32.totalorder %s35, 0
      %p240 = por %p238, %p239
      %p241 = scmp.ne.s32.totalorder %s227, %s228
      %p242 = scmp.eq.s32.totalorder %s36, 3
      %p243 = por %p241, %p242
      %p245 = scmp.ne.s32.totalorder %s228, %s244
      %p246 = scmp.eq.s32.totalorder %s36, 0
      %p247 = por %p245, %p246
      %s248 = ssub.s32 %s38, %s45
      %p249 = scmp.eq.s32.totalorder %s248, 0
      %s251 = sadd.s32 %s250, 1
      %s252 = scalar_select %p249, %s250, %s251
      %p255 = pneg %p249
      %p256 = scmp.eq.s32.totalorder %s30, 3
      %p257 = por %p255, %p256
      %p258 = scmp.ne.s32.totalorder %s250, %s253
      %p259 = scmp.eq.s32.totalorder %s30, 0
      %p260 = por %p258, %p259
      %p261 = scmp.ne.s32.totalorder %s250, %s253
      %p262 = scmp.eq.s32.totalorder %s35, 3
      %p263 = por %p261, %p262
      %p264 = scmp.ne.s32.totalorder %s253, %s254
      %p265 = scmp.eq.s32.totalorder %s35, 0
      %p266 = por %p264, %p265
      %p267 = scmp.ne.s32.totalorder %s253, %s254
      %p268 = scmp.eq.s32.totalorder %s36, 3
      %p269 = por %p267, %p268
      %p271 = scmp.ne.s32.totalorder %s254, %s270
      %p272 = scmp.eq.s32.totalorder %s36, 0
      %p273 = por %p271, %p272
      %s274 = ssub.s32 %s38, %s45
      %p275 = scmp.eq.s32.totalorder %s274, 0
      %s277 = sadd.s32 %s276, 1
      %s278 = scalar_select %p275, %s276, %s277
      %p281 = pneg %p275
      %p282 = scmp.eq.s32.totalorder %s30, 3
      %p283 = por %p281, %p282
      %p284 = scmp.ne.s32.totalorder %s276, %s279
      %p285 = scmp.eq.s32.totalorder %s30, 0
      %p286 = por %p284, %p285
      %p287 = scmp.ne.s32.totalorder %s276, %s279
      %p288 = scmp.eq.s32.totalorder %s35, 3
      %p289 = por %p287, %p288
      %p290 = scmp.ne.s32.totalorder %s279, %s280
      %p291 = scmp.eq.s32.totalorder %s35, 0
      %p292 = por %p290, %p291
      %p293 = scmp.ne.s32.totalorder %s279, %s280
      %p294 = scmp.eq.s32.totalorder %s36, 3
      %p295 = por %p293, %p294
      %p297 = scmp.ne.s32.totalorder %s280, %s296
      %p298 = scmp.eq.s32.totalorder %s36, 0
      %p299 = por %p297, %p298
      %s300 = ssub.s32 %s38, %s45
      %p301 = scmp.eq.s32.totalorder %s300, 0
      %s303 = sadd.s32 %s302, 1
      %s304 = scalar_select %p301, %s302, %s303
      %p307 = pneg %p301
      %p308 = scmp.eq.s32.totalorder %s30, 3
      %p309 = por %p307, %p308
      %p310 = scmp.ne.s32.totalorder %s302, %s305
      %p311 = scmp.eq.s32.totalorder %s30, 0
      %p312 = por %p310, %p311
      %p313 = scmp.ne.s32.totalorder %s302, %s305
      %p314 = scmp.eq.s32.totalorder %s35, 3
      %p315 = por %p313, %p314
      %p316 = scmp.ne.s32.totalorder %s305, %s306
      %p317 = scmp.eq.s32.totalorder %s35, 0
      %p318 = por %p316, %p317
      %p319 = scmp.ne.s32.totalorder %s305, %s306
      %p320 = scmp.eq.s32.totalorder %s36, 3
      %p321 = por %p319, %p320
      %p323 = scmp.ne.s32.totalorder %s306, %s322
      %p324 = scmp.eq.s32.totalorder %s36, 0
      %p325 = por %p323, %p324
      %s326 = ssub.s32 %s38, %s45
      %p327 = scmp.eq.s32.totalorder %s326, 0
      %s329 = sadd.s32 %s328, 1
      %s330 = scalar_select %p327, %s328, %s329
      %p333 = pneg %p327
      %p334 = scmp.eq.s32.totalorder %s30, 3
      %p335 = por %p333, %p334
      %p336 = scmp.ne.s32.totalorder %s328, %s331
      %p337 = scmp.eq.s32.totalorder %s30, 0
      %p338 = por %p336, %p337
      %p339 = scmp.ne.s32.totalorder %s328, %s331
      %p340 = scmp.eq.s32.totalorder %s35, 3
      %p341 = por %p339, %p340
      %p342 = scmp.ne.s32.totalorder %s331, %s332
      %p343 = scmp.eq.s32.totalorder %s35, 0
      %p344 = por %p342, %p343
      %p345 = scmp.ne.s32.totalorder %s331, %s332
      %p346 = scmp.eq.s32.totalorder %s36, 3
      %p347 = por %p345, %p346
      %p349 = scmp.ne.s32.totalorder %s332, %s348
      %p350 = scmp.eq.s32.totalorder %s36, 0
      %p351 = por %p349, %p350
      %s352 = ssub.s32 %s38, %s45
      %p353 = scmp.eq.s32.totalorder %s352, 0
      %s355 = sadd.s32 %s354, 1
      %s356 = scalar_select %p353, %s354, %s355
      %p359 = pneg %p353
      %p360 = scmp.eq.s32.totalorder %s30, 3
      %p361 = por %p359, %p360
      %p362 = scmp.ne.s32.totalorder %s354, %s357
      %p363 = scmp.eq.s32.totalorder %s30, 0
      %p364 = por %p362, %p363
      %p365 = scmp.ne.s32.totalorder %s354, %s357
      %p366 = scmp.eq.s32.totalorder %s35, 3
      %p367 = por %p365, %p366
      %p368 = scmp.ne.s32.totalorder %s357, %s358
      %p369 = scmp.eq.s32.totalorder %s35, 0
      %p370 = por %p368, %p369
      %p371 = scmp.ne.s32.totalorder %s357, %s358
      %p372 = scmp.eq.s32.totalorder %s36, 3
      %p373 = por %p371, %p372
      %p375 = scmp.ne.s32.totalorder %s358, %s374
      %p376 = scmp.eq.s32.totalorder %s36, 0
      %p377 = por %p375, %p376
      %s378 = ssub.s32 %s38, %s45
      %p379 = scmp.eq.s32.totalorder %s378, 0
      %s381 = sadd.s32 %s380, 1
      %s382 = scalar_select %p379, %s380, %s381
      %p385 = pneg %p379
      %p386 = scmp.eq.s32.totalorder %s30, 3
      %p387 = por %p385, %p386
      %p388 = scmp.ne.s32.totalorder %s380, %s383
      %p389 = scmp.eq.s32.totalorder %s30, 0
      %p390 = por %p388, %p389
      %p391 = scmp.ne.s32.totalorder %s380, %s383
      %p392 = scmp.eq.s32.totalorder %s35, 3
      %p393 = por %p391, %p392
      %p394 = scmp.ne.s32.totalorder %s383, %s384
      %p395 = scmp.eq.s32.totalorder %s35, 0
      %p396 = por %p394, %p395
      %p397 = scmp.ne.s32.totalorder %s383, %s384
      %p398 = scmp.eq.s32.totalorder %s36, 3
      %p399 = por %p397, %p398
      %p401 = scmp.ne.s32.totalorder %s384, %s400
      %p402 = scmp.eq.s32.totalorder %s36, 0
      %p403 = por %p401, %p402
      %s404 = ssub.s32 %s38, %s45
      %p405 = scmp.eq.s32.totalorder %s404, 0
      %s407 = sadd.s32 %s406, 1
      %s408 = scalar_select %p405, %s406, %s407
      %p411 = pneg %p405
      %p412 = scmp.eq.s32.totalorder %s30, 3
      %p413 = por %p411, %p412
      %p414 = scmp.ne.s32.totalorder %s406, %s409
      %p415 = scmp.eq.s32.totalorder %s30, 0
      %p416 = por %p414, %p415
      %p417 = scmp.ne.s32.totalorder %s406, %s409
      %p418 = scmp.eq.s32.totalorder %s35, 3
      %p419 = por %p417, %p418
      %p420 = scmp.ne.s32.totalorder %s409, %s410
      %p421 = scmp.eq.s32.totalorder %s35, 0
      %p422 = por %p420, %p421
      %p423 = scmp.ne.s32.totalorder %s409, %s410
      %p424 = scmp.eq.s32.totalorder %s36, 3
      %p425 = por %p423, %p424
      %p427 = scmp.ne.s32.totalorder %s410, %s426
      %p428 = scmp.eq.s32.totalorder %s36, 0
      %p429 = por %p427, %p428
      %s430 = ssub.s32 %s38, %s45
      %p431 = scmp.eq.s32.totalorder %s430, 0
      %s433 = sadd.s32 %s432, 1
      %s434 = scalar_select %p431, %s432, %s433
      %p437 = pneg %p431
      %p438 = scmp.eq.s32.totalorder %s30, 3
      %p439 = por %p437, %p438
      %p440 = scmp.ne.s32.totalorder %s432, %s435
      %p441 = scmp.eq.s32.totalorder %s30, 0
      %p442 = por %p440, %p441
      %p443 = scmp.ne.s32.totalorder %s432, %s435
      %p444 = scmp.eq.s32.totalorder %s35, 3
      %p445 = por %p443, %p444
      %p446 = scmp.ne.s32.totalorder %s435, %s436
      %p447 = scmp.eq.s32.totalorder %s35, 0
      %p448 = por %p446, %p447
      %p449 = scmp.ne.s32.totalorder %s435, %s436
      %p450 = scmp.eq.s32.totalorder %s36, 3
      %p451 = por %p449, %p450
      %p453 = scmp.ne.s32.totalorder %s436, %s452
      %p454 = scmp.eq.s32.totalorder %s36, 0
      %p455 = por %p453, %p454
      %s456 = ssub.s32 %s37, %s49
      %p457 = scmp.eq.s32.totalorder %s456, 0
      %s459 = sadd.s32 %s458, 1
      %s460 = scalar_select %p457, %s458, %s459
      %p463 = pneg %p457
      %p464 = scmp.eq.s32.totalorder %s30, 3
      %p465 = por %p463, %p464
      %p466 = scmp.ne.s32.totalorder %s458, %s461
      %p467 = scmp.eq.s32.totalorder %s30, 0
      %p468 = por %p466, %p467
      %p469 = scmp.ne.s32.totalorder %s458, %s461
      %p470 = scmp.eq.s32.totalorder %s35, 3
      %p471 = por %p469, %p470
      %p472 = scmp.ne.s32.totalorder %s461, %s462
      %p473 = scmp.eq.s32.totalorder %s35, 0
      %p474 = por %p472, %p473
      %p475 = scmp.ne.s32.totalorder %s461, %s462
      %p476 = scmp.eq.s32.totalorder %s36, 3
      %p477 = por %p475, %p476
      %p479 = scmp.ne.s32.totalorder %s462, %s478
      %p480 = scmp.eq.s32.totalorder %s36, 0
      %p481 = por %p479, %p480
      %s483 = sadd.s32 %s482, 1
      %p486 = scmp.eq.s32.totalorder %s30, 3
      %p487 = scmp.ne.s32.totalorder %s482, %s484
      %p488 = scmp.eq.s32.totalorder %s30, 0
      %p489 = por %p487, %p488
      %p490 = scmp.ne.s32.totalorder %s482, %s484
      %p491 = scmp.eq.s32.totalorder %s35, 3
      %p492 = por %p490, %p491
      %p493 = scmp.ne.s32.totalorder %s484, %s485
      %p494 = scmp.eq.s32.totalorder %s35, 0
      %p495 = por %p493, %p494
      %p496 = scmp.ne.s32.totalorder %s484, %s485
      %p497 = scmp.eq.s32.totalorder %s36, 3
      %p498 = por %p496, %p497
      %p500 = scmp.ne.s32.totalorder %s485, %s499
      %p501 = scmp.eq.s32.totalorder %s36, 0
      %p502 = por %p500, %p501
      %s504 = sadd.s32 %s503, 1
      %p507 = scmp.eq.s32.totalorder %s30, 3
      %p508 = scmp.ne.s32.totalorder %s503, %s505
      %p509 = scmp.eq.s32.totalorder %s30, 0
      %p510 = por %p508, %p509
      %p511 = scmp.ne.s32.totalorder %s503, %s505
      %p512 = scmp.eq.s32.totalorder %s35, 3
      %p513 = por %p511, %p512
      %p514 = scmp.ne.s32.totalorder %s505, %s506
      %p515 = scmp.eq.s32.totalorder %s35, 0
      %p516 = por %p514, %p515
      %p517 = scmp.ne.s32.totalorder %s505, %s506
      %p518 = scmp.eq.s32.totalorder %s36, 3
      %p519 = por %p517, %p518
      %p521 = scmp.ne.s32.totalorder %s506, %s520
      %p522 = scmp.eq.s32.totalorder %s36, 0
      %p523 = por %p521, %p522
      %s525 = sadd.s32 %s524, 1
      %p528 = scmp.eq.s32.totalorder %s30, 3
      %p529 = scmp.ne.s32.totalorder %s524, %s526
      %p530 = scmp.eq.s32.totalorder %s30, 0
      %p531 = por %p529, %p530
      %p532 = scmp.ne.s32.totalorder %s524, %s526
      %p533 = scmp.eq.s32.totalorder %s35, 3
      %p534 = por %p532, %p533
      %p535 = scmp.ne.s32.totalorder %s526, %s527
      %p536 = scmp.eq.s32.totalorder %s35, 0
      %p537 = por %p535, %p536
      %p538 = scmp.ne.s32.totalorder %s526, %s527
      %p539 = scmp.eq.s32.totalorder %s36, 3
      %p540 = por %p538, %p539
      %p542 = scmp.ne.s32.totalorder %s527, %s541
      %p543 = scmp.eq.s32.totalorder %s36, 0
      %p544 = por %p542, %p543
      %s546 = sadd.s32 %s545, 1
      %p549 = scmp.eq.s32.totalorder %s30, 3
      %p550 = scmp.ne.s32.totalorder %s545, %s547
      %p551 = scmp.eq.s32.totalorder %s30, 0
      %p552 = por %p550, %p551
      %p553 = scmp.ne.s32.totalorder %s545, %s547
      %p554 = scmp.eq.s32.totalorder %s35, 3
      %p555 = por %p553, %p554
      %p556 = scmp.ne.s32.totalorder %s547, %s548
      %p557 = scmp.eq.s32.totalorder %s35, 0
      %p558 = por %p556, %p557
      %p559 = scmp.ne.s32.totalorder %s547, %s548
      %p560 = scmp.eq.s32.totalorder %s36, 3
      %p561 = por %p559, %p560
      %p563 = scmp.ne.s32.totalorder %s548, %s562
      %p564 = scmp.eq.s32.totalorder %s36, 0
      %p565 = por %p563, %p564
      %s566 = ssub.s32 %s37, %s49
      %p567 = scmp.eq.s32.totalorder %s566, 0
      %s569 = sadd.s32 %s568, 1
      %s570 = scalar_select %p567, %s568, %s569
      %p573 = pneg %p567
      %p574 = scmp.eq.s32.totalorder %s30, 3
      %p575 = por %p573, %p574
      %p576 = scmp.ne.s32.totalorder %s568, %s571
      %p577 = scmp.eq.s32.totalorder %s30, 0
      %p578 = por %p576, %p577
      %p579 = scmp.ne.s32.totalorder %s568, %s571
      %p580 = scmp.eq.s32.totalorder %s35, 3
      %p581 = por %p579, %p580
      %p582 = scmp.ne.s32.totalorder %s571, %s572
      %p583 = scmp.eq.s32.totalorder %s35, 0
      %p584 = por %p582, %p583
      %p585 = scmp.ne.s32.totalorder %s571, %s572
      %p586 = scmp.eq.s32.totalorder %s36, 3
      %p587 = por %p585, %p586
      %p589 = scmp.ne.s32.totalorder %s572, %s588
      %p590 = scmp.eq.s32.totalorder %s36, 0
      %p591 = por %p589, %p590
      %p592 = scmp.le.s32.totalorder 1, %s30
      %p593 = scmp.lt.s32.totalorder %s30, 5
      %p594 = pnand %p592, %p593
      %p595 = pneg %p594
      // Predicated region
      $region9: #{bert_with_numeric_forward.1} parent=5 // pred_check
        _
      $region10: #{bert_with_numeric_forward.1} parent=5 // pred_check_branch
        %597 = sbr.rel (%p594) target = $region12
      $region11: #{bert_with_numeric_forward.1} parent=5 // pred_region
        %s598 = ssub.s32 %s30, 1
        // Predicated region
        $region13: #{bert_with_numeric_forward.1} parent=11 // pred_check
          %p599 = pneg %p115
        $region14: #{bert_with_numeric_forward.1} parent=11 // pred_check_branch
          %601 = sbr.rel (%p599) target = $region16
        $region15: #{bert_with_numeric_forward.1} parent=11 // pred_region
          _
        $region16: #{bert_with_numeric_forward.1} parent=11 // pred_fallthru
          _
        // Predicated region
        $region17: #{bert_with_numeric_forward.1} parent=11 // pred_check
          %p602 = pneg %p136
        $region18: #{bert_with_numeric_forward.1} parent=11 // pred_check_branch
          %604 = sbr.rel (%p602) target = $region20
        $region19: #{bert_with_numeric_forward.1} parent=11 // pred_region
          _
        $region20: #{bert_with_numeric_forward.1} parent=11 // pred_fallthru
          _
        // Predicated region
        $region21: #{bert_with_numeric_forward.1} parent=11 // pred_check
          %p605 = pneg %p495
        $region22: #{bert_with_numeric_forward.1} parent=11 // pred_check_branch
          %607 = sbr.rel (%p605) target = $region24
        $region23: #{bert_with_numeric_forward.1} parent=11 // pred_region
          _
        $region24: #{bert_with_numeric_forward.1} parent=11 // pred_fallthru
          _
        // Predicated region
        $region25: #{bert_with_numeric_forward.1} parent=11 // pred_check
          %p608 = pneg %p516
        $region26: #{bert_with_numeric_forward.1} parent=11 // pred_check_branch
          %610 = sbr.rel (%p608) target = $region28
        $region27: #{bert_with_numeric_forward.1} parent=11 // pred_region
          _
        $region28: #{bert_with_numeric_forward.1} parent=11 // pred_fallthru
          _
        // Predicated region
        $region29: #{bert_with_numeric_forward.1} parent=11 // pred_check
          %p611 = pneg %p537
        $region30: #{bert_with_numeric_forward.1} parent=11 // pred_check_branch
          %613 = sbr.rel (%p611) target = $region32
        $region31: #{bert_with_numeric_forward.1} parent=11 // pred_region
          _
        $region32: #{bert_with_numeric_forward.1} parent=11 // pred_fallthru
          _
        // Predicated region
        $region33: #{bert_with_numeric_forward.1} parent=11 // pred_check
          %p614 = pneg %p558
        $region34: #{bert_with_numeric_forward.1} parent=11 // pred_check_branch
          %616 = sbr.rel (%p614) target = $region36
        $region35: #{bert_with_numeric_forward.1} parent=11 // pred_region
          _
        $region36: #{bert_with_numeric_forward.1} parent=11 // pred_fallthru
          _
      $region12: #{bert_with_numeric_forward.1} parent=5 // pred_fallthru
        _
      %p617 = scmp.lt.s32.totalorder %s30, 4
      // Predicated region
      $region37: #{bert_with_numeric_forward.1} parent=5 // pred_check
        %p618 = pneg %p617
      $region38: #{bert_with_numeric_forward.1} parent=5 // pred_check_branch
        %620 = sbr.rel (%p618) target = $region40
      $region39: #{bert_with_numeric_forward.1} parent=5 // pred_region
        // Predicated region
        $region41: #{bert_with_numeric_forward.1} parent=39 // pred_check
          %p621 = pneg %p62
        $region42: #{bert_with_numeric_forward.1} parent=39 // pred_check_branch
          %623 = sbr.rel (%p621) target = $region44
        $region43: #{bert_with_numeric_forward.1} parent=39 // pred_region
          %p624 = scmp.lt.s32.totalorder %s37, 1
          %s625 = scalar_select %p624, %s37, 1
          %s626 = scalar_lea.vmem %s0, %s625
        $region44: #{bert_with_numeric_forward.1} parent=39 // pred_fallthru
          _
        // Predicated region
        $region45: #{bert_with_numeric_forward.1} parent=39 // pred_check
          %p627 = pneg %p88
        $region46: #{bert_with_numeric_forward.1} parent=39 // pred_check_branch
          %629 = sbr.rel (%p627) target = $region48
        $region47: #{bert_with_numeric_forward.1} parent=39 // pred_region
          %p630 = scmp.lt.s32.totalorder %s37, 1
          %s631 = scalar_select %p630, %s37, 1
          %s632 = smul.addr %s631, 8
          %s633 = scalar_lea.vmem %s1, %s632
        $region48: #{bert_with_numeric_forward.1} parent=39 // pred_fallthru
          _
        // Predicated region
        $region49: #{bert_with_numeric_forward.1} parent=39 // pred_check
          %p634 = pneg %p156
        $region50: #{bert_with_numeric_forward.1} parent=39 // pred_check_branch
          %636 = sbr.rel (%p634) target = $region52
        $region51: #{bert_with_numeric_forward.1} parent=39 // pred_region
          %p637 = scmp.lt.s32.totalorder %s38, 1
          %s638 = scalar_select %p637, %s38, 1
          %s639 = smul.addr %s638, 4
          %s640 = smul.addr %s639, 8
          %s641 = scalar_lea.vmem %s4, %s640
        $region52: #{bert_with_numeric_forward.1} parent=39 // pred_fallthru
          _
        // Predicated region
        $region53: #{bert_with_numeric_forward.1} parent=39 // pred_check
          %p642 = pneg %p182
        $region54: #{bert_with_numeric_forward.1} parent=39 // pred_check_branch
          %644 = sbr.rel (%p642) target = $region56
        $region55: #{bert_with_numeric_forward.1} parent=39 // pred_region
          %p645 = scmp.lt.s32.totalorder %s38, 1
          %s646 = scalar_select %p645, %s38, 1
          %s647 = scalar_lea.vmem %s5, %s646
        $region56: #{bert_with_numeric_forward.1} parent=39 // pred_fallthru
          _
        // Predicated region
        $region57: #{bert_with_numeric_forward.1} parent=39 // pred_check
          %p648 = pneg %p208
        $region58: #{bert_with_numeric_forward.1} parent=39 // pred_check_branch
          %650 = sbr.rel (%p648) target = $region60
        $region59: #{bert_with_numeric_forward.1} parent=39 // pred_region
          %p651 = scmp.lt.s32.totalorder %s38, 1
          %s652 = scalar_select %p651, %s38, 1
          %s653 = smul.addr %s652, 4
          %s654 = smul.addr %s653, 8
          %s655 = scalar_lea.vmem %s6, %s654
        $region60: #{bert_with_numeric_forward.1} parent=39 // pred_fallthru
          _
        // Predicated region
        $region61: #{bert_with_numeric_forward.1} parent=39 // pred_check
          %p656 = pneg %p234
        $region62: #{bert_with_numeric_forward.1} parent=39 // pred_check_branch
          %658 = sbr.rel (%p656) target = $region64
        $region63: #{bert_with_numeric_forward.1} parent=39 // pred_region
          %p659 = scmp.lt.s32.totalorder %s38, 1
          %s660 = scalar_select %p659, %s38, 1
          %s661 = scalar_lea.vmem %s7, %s660
        $region64: #{bert_with_numeric_forward.1} parent=39 // pred_fallthru
          _
        // Predicated region
        $region65: #{bert_with_numeric_forward.1} parent=39 // pred_check
          %p662 = pneg %p260
        $region66: #{bert_with_numeric_forward.1} parent=39 // pred_check_branch
          %664 = sbr.rel (%p662) target = $region68
        $region67: #{bert_with_numeric_forward.1} parent=39 // pred_region
          %p665 = scmp.lt.s32.totalorder %s38, 1
          %s666 = scalar_select %p665, %s38, 1
          %s667 = scalar_lea.vmem %s8, %s666
        $region68: #{bert_with_numeric_forward.1} parent=39 // pred_fallthru
          _
        // Predicated region
        $region69: #{bert_with_numeric_forward.1} parent=39 // pred_check
          %p668 = pneg %p286
        $region70: #{bert_with_numeric_forward.1} parent=39 // pred_check_branch
          %670 = sbr.rel (%p668) target = $region72
        $region71: #{bert_with_numeric_forward.1} parent=39 // pred_region
          %p671 = scmp.lt.s32.totalorder %s38, 1
          %s672 = scalar_select %p671, %s38, 1
          %s673 = scalar_lea.vmem %s9, %s672
        $region72: #{bert_with_numeric_forward.1} parent=39 // pred_fallthru
          _
        // Predicated region
        $region73: #{bert_with_numeric_forward.1} parent=39 // pred_check
          %p674 = pneg %p312
        $region74: #{bert_with_numeric_forward.1} parent=39 // pred_check_branch
          %676 = sbr.rel (%p674) target = $region76
        $region75: #{bert_with_numeric_forward.1} parent=39 // pred_region
          %p677 = scmp.lt.s32.totalorder %s38, 1
          %s678 = scalar_select %p677, %s38, 1
          %s679 = smul.addr %s678, 4
          %s680 = smul.addr %s679, 8
          %s681 = scalar_lea.vmem %s10, %s680
        $region76: #{bert_with_numeric_forward.1} parent=39 // pred_fallthru
          _
        // Predicated region
        $region77: #{bert_with_numeric_forward.1} parent=39 // pred_check
          %p682 = pneg %p338
        $region78: #{bert_with_numeric_forward.1} parent=39 // pred_check_branch
          %684 = sbr.rel (%p682) target = $region80
        $region79: #{bert_with_numeric_forward.1} parent=39 // pred_region
          %p685 = scmp.lt.s32.totalorder %s38, 1
          %s686 = scalar_select %p685, %s38, 1
          %s687 = scalar_lea.vmem %s11, %s686
        $region80: #{bert_with_numeric_forward.1} parent=39 // pred_fallthru
          _
        // Predicated region
        $region81: #{bert_with_numeric_forward.1} parent=39 // pred_check
          %p688 = pneg %p364
        $region82: #{bert_with_numeric_forward.1} parent=39 // pred_check_branch
          %690 = sbr.rel (%p688) target = $region84
        $region83: #{bert_with_numeric_forward.1} parent=39 // pred_region
          %p691 = scmp.lt.s32.totalorder %s38, 1
          %s692 = scalar_select %p691, %s38, 1
          %s693 = smul.addr %s692, 8
          %s694 = smul.addr %s693, 8
          %s695 = scalar_lea.vmem %s12, %s694
        $region84: #{bert_with_numeric_forward.1} parent=39 // pred_fallthru
          _
        // Predicated region
        $region85: #{bert_with_numeric_forward.1} parent=39 // pred_check
          %p696 = pneg %p390
        $region86: #{bert_with_numeric_forward.1} parent=39 // pred_check_branch
          %698 = sbr.rel (%p696) target = $region88
        $region87: #{bert_with_numeric_forward.1} parent=39 // pred_region
          %p699 = scmp.lt.s32.totalorder %s38, 1
          %s700 = scalar_select %p699, %s38, 1
          %s701 = scalar_lea.vmem %s13, %s700
        $region88: #{bert_with_numeric_forward.1} parent=39 // pred_fallthru
          _
        // Predicated region
        $region89: #{bert_with_numeric_forward.1} parent=39 // pred_check
          %p702 = pneg %p416
        $region90: #{bert_with_numeric_forward.1} parent=39 // pred_check_branch
          %704 = sbr.rel (%p702) target = $region92
        $region91: #{bert_with_numeric_forward.1} parent=39 // pred_region
          %p705 = scmp.lt.s32.totalorder %s38, 1
          %s706 = scalar_select %p705, %s38, 1
          %s707 = scalar_lea.vmem %s14, %s706
        $region92: #{bert_with_numeric_forward.1} parent=39 // pred_fallthru
          _
        // Predicated region
        $region93: #{bert_with_numeric_forward.1} parent=39 // pred_check
          %p708 = pneg %p442
        $region94: #{bert_with_numeric_forward.1} parent=39 // pred_check_branch
          %710 = sbr.rel (%p708) target = $region96
        $region95: #{bert_with_numeric_forward.1} parent=39 // pred_region
          %p711 = scmp.lt.s32.totalorder %s38, 1
          %s712 = scalar_select %p711, %s38, 1
          %s713 = scalar_lea.vmem %s15, %s712
        $region96: #{bert_with_numeric_forward.1} parent=39 // pred_fallthru
          _
        // Predicated region
        $region97: #{bert_with_numeric_forward.1} parent=39 // pred_check
          %p714 = pneg %p468
        $region98: #{bert_with_numeric_forward.1} parent=39 // pred_check_branch
          %716 = sbr.rel (%p714) target = $region100
        $region99: #{bert_with_numeric_forward.1} parent=39 // pred_region
          %p717 = scmp.lt.s32.totalorder %s37, 1
          %s718 = scalar_select %p717, %s37, 1
          %s719 = scalar_lea.vmem %s16, %s718
        $region100: #{bert_with_numeric_forward.1} parent=39 // pred_fallthru
          _
      $region40: #{bert_with_numeric_forward.1} parent=5 // pred_fallthru
        _
      %p720 = scmp.le.s32.totalorder 1, %s30
      %p721 = scmp.lt.s32.totalorder %s30, 5
      %p722 = pnand %p720, %p721
      %p723 = pneg %p722
      // Predicated region
      $region101: #{bert_with_numeric_forward.1} parent=5 // pred_check
        _
      $region102: #{bert_with_numeric_forward.1} parent=5 // pred_check_branch
        %725 = sbr.rel (%p722) target = $region104
      $region103: #{bert_with_numeric_forward.1} parent=5 // pred_region
        %s726 = ssub.s32 %s30, 1
        %p727 = scmp.lt.s32.totalorder %s39, 1
        %s728 = scalar_select %p727, %s39, 1
        %s729 = scalar_lea.vmem %s0, %s728
        %p730 = pneg %p68
        %p731 = pneg %p65
        %p732 = scmp.lt.s32.totalorder %s39, 1
        %s733 = scalar_select %p732, %s39, 1
        %s734 = smul.addr %s733, 8
        %s735 = scalar_lea.vmem %s1, %s734
        %p736 = pneg %p94
        %p737 = pneg %p91
        %p738 = pneg %p115
        %p739 = pneg %p112
        %p740 = pneg %p136
        %p741 = pneg %p133
        %p742 = scmp.lt.s32.totalorder %s40, 1
        %s743 = scalar_select %p742, %s40, 1
        %s744 = smul.addr %s743, 4
        %s745 = smul.addr %s744, 8
        %s746 = scalar_lea.vmem %s4, %s745
        %p747 = pneg %p162
        %p748 = pneg %p159
        %p749 = scmp.lt.s32.totalorder %s40, 1
        %s750 = scalar_select %p749, %s40, 1
        %s751 = scalar_lea.vmem %s5, %s750
        %p752 = pneg %p188
        %p753 = pneg %p185
        %p754 = scmp.lt.s32.totalorder %s40, 1
        %s755 = scalar_select %p754, %s40, 1
        %s756 = smul.addr %s755, 4
        %s757 = smul.addr %s756, 8
        %s758 = scalar_lea.vmem %s6, %s757
        %p759 = pneg %p214
        %p760 = pneg %p211
        %p761 = scmp.lt.s32.totalorder %s40, 1
        %s762 = scalar_select %p761, %s40, 1
        %s763 = scalar_lea.vmem %s7, %s762
        %p764 = pneg %p240
        %p765 = pneg %p237
        %p766 = scmp.lt.s32.totalorder %s40, 1
        %s767 = scalar_select %p766, %s40, 1
        %s768 = scalar_lea.vmem %s8, %s767
        %p769 = pneg %p266
        %p770 = pneg %p263
        %p771 = scmp.lt.s32.totalorder %s40, 1
        %s772 = scalar_select %p771, %s40, 1
        %s773 = scalar_lea.vmem %s9, %s772
        %p774 = pneg %p292
        %p775 = pneg %p289
        %p776 = scmp.lt.s32.totalorder %s40, 1
        %s777 = scalar_select %p776, %s40, 1
        %s778 = smul.addr %s777, 4
        %s779 = smul.addr %s778, 8
        %s780 = scalar_lea.vmem %s10, %s779
        %p781 = pneg %p318
        %p782 = pneg %p315
        %p783 = scmp.lt.s32.totalorder %s40, 1
        %s784 = scalar_select %p783, %s40, 1
        %s785 = scalar_lea.vmem %s11, %s784
        %p786 = pneg %p344
        %p787 = pneg %p341
        %p788 = scmp.lt.s32.totalorder %s40, 1
        %s789 = scalar_select %p788, %s40, 1
        %s790 = smul.addr %s789, 8
        %s791 = smul.addr %s790, 8
        %s792 = scalar_lea.vmem %s12, %s791
        %p793 = pneg %p370
        %p794 = pneg %p367
        %p795 = scmp.lt.s32.totalorder %s40, 1
        %s796 = scalar_select %p795, %s40, 1
        %s797 = scalar_lea.vmem %s13, %s796
        %p798 = pneg %p396
        %p799 = pneg %p393
        %p800 = scmp.lt.s32.totalorder %s40, 1
        %s801 = scalar_select %p800, %s40, 1
        %s802 = scalar_lea.vmem %s14, %s801
        %p803 = pneg %p422
        %p804 = pneg %p419
        %p805 = scmp.lt.s32.totalorder %s40, 1
        %s806 = scalar_select %p805, %s40, 1
        %s807 = scalar_lea.vmem %s15, %s806
        %p808 = pneg %p448
        %p809 = pneg %p445
        %p810 = scmp.lt.s32.totalorder %s39, 1
        %s811 = scalar_select %p810, %s39, 1
        %s812 = scalar_lea.vmem %s16, %s811
        %p813 = pneg %p474
        %p814 = pneg %p471
        %p815 = pneg %p495
        %p816 = pneg %p492
        %p817 = pneg %p516
        %p818 = pneg %p513
        %p819 = pneg %p537
        %p820 = pneg %p534
        %p821 = pneg %p558
        %p822 = pneg %p555
        %p823 = pneg %p584
        %p824 = pneg %p581
        %s825 = sand.u32 %s571, 1
        %s826 = scalar_lea.sflag [#allocation4], %s825
        %s827 = sand.u32 %s571, 1
        %s828 = scalar_lea.vmem [#allocation3], %s827
        %p829 = scmp.lt.s32.totalorder %s39, 1
        %s830 = scalar_select %p829, %s39, 1
        %s831 = scalar_lea.vmem %s0, %s830
        %p832 = scmp.lt.s32.totalorder %s39, 1
        %s833 = scalar_select %p832, %s39, 1
        %s834 = smul.addr %s833, 8
        %s835 = scalar_lea.vmem %s1, %s834
        %p836 = scmp.lt.s32.totalorder %s40, 1
        %s837 = scalar_select %p836, %s40, 1
        %s838 = smul.addr %s837, 4
        %s839 = smul.addr %s838, 8
        %s840 = scalar_lea.vmem %s4, %s839
        %p841 = scmp.lt.s32.totalorder %s40, 1
        %s842 = scalar_select %p841, %s40, 1
        %s843 = scalar_lea.vmem %s5, %s842
        %p844 = scmp.lt.s32.totalorder %s40, 1
        %s845 = scalar_select %p844, %s40, 1
        %s846 = smul.addr %s845, 4
        %s847 = smul.addr %s846, 8
        %s848 = scalar_lea.vmem %s6, %s847
        %p849 = scmp.lt.s32.totalorder %s40, 1
        %s850 = scalar_select %p849, %s40, 1
        %s851 = scalar_lea.vmem %s7, %s850
        %p852 = scmp.lt.s32.totalorder %s40, 1
        %s853 = scalar_select %p852, %s40, 1
        %s854 = scalar_lea.vmem %s8, %s853
        %p855 = scmp.lt.s32.totalorder %s40, 1
        %s856 = scalar_select %p855, %s40, 1
        %s857 = scalar_lea.vmem %s9, %s856
        %p858 = scmp.lt.s32.totalorder %s40, 1
        %s859 = scalar_select %p858, %s40, 1
        %s860 = smul.addr %s859, 4
        %s861 = smul.addr %s860, 8
        %s862 = scalar_lea.vmem %s10, %s861
        %p863 = scmp.lt.s32.totalorder %s40, 1
        %s864 = scalar_select %p863, %s40, 1
        %s865 = scalar_lea.vmem %s11, %s864
        %p866 = scmp.lt.s32.totalorder %s40, 1
        %s867 = scalar_select %p866, %s40, 1
        %s868 = smul.addr %s867, 8
        %s869 = smul.addr %s868, 8
        %s870 = scalar_lea.vmem %s12, %s869
        %p871 = scmp.lt.s32.totalorder %s40, 1
        %s872 = scalar_select %p871, %s40, 1
        %s873 = scalar_lea.vmem %s13, %s872
        %p874 = scmp.lt.s32.totalorder %s40, 1
        %s875 = scalar_select %p874, %s40, 1
        %s876 = scalar_lea.vmem %s14, %s875
        %p877 = scmp.lt.s32.totalorder %s40, 1
        %s878 = scalar_select %p877, %s40, 1
        %s879 = scalar_lea.vmem %s15, %s878
        %p880 = scmp.lt.s32.totalorder %s39, 1
        %s881 = scalar_select %p880, %s39, 1
        %s882 = scalar_lea.vmem %s16, %s881
        %p883 = scmp.eq.s32.totalorder %s40, 0
        // Predicated region
        $region105: #{bert_with_numeric_forward.1} parent=103 // pred_check
          %p884 = pneg %p883
        $region106: #{bert_with_numeric_forward.1} parent=103 // pred_check_branch
          %886 = sbr.rel (%p884) target = $region108
        $region107: #{bert_with_numeric_forward.1} parent=103 // pred_region
          %v887 = vld [vmem:[%s835] sm:$0xff]
          %v888 = vld [vmem:[%s2] sm:$0x1]
          %v889 = vld [vmem:[%s3] sm:$0x1]
          %vm890 = vcmask 261120
          %v891 = vsel %vm890, %v887, 0.0
          %892 = vadd.xlane.f32.xlu0 %v891
          %v893 = vpop.xlane.xlu0 %892
          %v894 = vrcp.pop 32.0
          %v895 = vmul.f32 %v893, %v894
          %v896 = vsub.f32 %v887, %v895
          %v897 = vmul.f32 %v896, %v896
          %v898 = vsel %vm890, %v897, 0.0
          %899 = vadd.xlane.f32.xlu0 %v898
          %v900 = vpop.xlane.xlu0 %899
          %v901 = vmul.f32 %v900, %v894
          %v902 = vadd.f32 %v901, 1e-12
          %v903 = vrsqrt.pop %v902
          %v904 = vmul.f32 %v896, %v903
          %v906 = vlaneseq
          %v907 = vshrl.u32 %v906, 7
          %v908 = vsub.s32 0, %v907
          %v909 = vrot.slane %v888, %v908
          %v911 = vmul.f32 %v904, %v909
          %v913 = vlaneseq
          %v914 = vshrl.u32 %v913, 7
          %v915 = vsub.s32 0, %v914
          %v916 = vrot.slane %v889, %v915
          %v918 = vadd.f32 %v911, %v916
          %919 = vst.msk [vmem:[#allocation2] sm:$0xff] %vm890, %v918
        $region108: #{bert_with_numeric_forward.1} parent=103 // pred_fallthru
          _
        %v920 = vld [vmem:[#allocation2] sm:$0xff]
        %v921 = vld [vmem:[%s831] sm:$0x1]
        %v922 = vld [vmem:[%s840] sm:$0xff]
        %v923 = vld [vmem:[%s840 + $0x8] sm:$0xff]
        %v924 = vld [vmem:[%s840 + $0x10] sm:$0xff]
        %v925 = vld [vmem:[%s840 + $0x18] sm:$0xff]
        %v926 = vld [vmem:[%s843] sm:$0x1]
        %v928 = vlaneseq
        %v929 = vshrl.u32 %v928, 7
        %v930 = vsub.s32 0, %v929
        %v931 = vrot.slane %v926, %v930
        %vm933 = vcmask 261120
        %v935 = vsel %vm933, %v920, 0
        %937 = vmatprep.subr.mxu0 0.0
        %938 = vmatpush1.msra.mxu0 0.0
        %939 = vmatprep.subr.mxu0 0.0
        %940 = vmatpush1.msra.mxu0 0.0
        %941 = vmatprep.subr.mxu0 0.0
        %942 = vmatpush1.msra.mxu0 0.0
        %943 = vmatprep.subr.mxu0 0.0
        %944 = vmatpush1.msra.mxu0 0.0
        %945 = vmatprep.subr.mxu0 0.0
        %946 = vmatpush1.msra.mxu0 0.0
        %947 = vmatprep.subr.mxu0 0.0
        %948 = vmatpush1.msra.mxu0 0.0
        %949 = vmatprep.subr.mxu0 0.0
        %950 = vmatpush1.msra.mxu0 0.0
        %951 = vmatprep.subr.mxu0 0.0
        %952 = vmatpush1.msra.mxu0 0.0
        %953 = vmatprep.subr.mxu0 0.0
        %954 = vmatpush1.msra.mxu0 0.0
        %955 = vmatprep.subr.mxu0 0.0
        %956 = vmatpush1.msra.mxu0 0.0
        %957 = vmatprep.subr.mxu0 0.0
        %958 = vmatpush1.msra.mxu0 0.0
        %959 = vmatprep.subr.mxu0 0.0
        %960 = vmatpush1.msra.mxu0 0.0
        %961 = vmatprep.subr.mxu0 0.0
        %962 = vmatpush1.msra.mxu0 %v925
        %963 = vmatprep.subr.mxu0 0.0
        %964 = vmatpush1.msra.mxu0 %v924
        %965 = vmatprep.subr.mxu0 0.0
        %966 = vmatpush1.msra.mxu0 %v923
        %967 = vmatprep.subr.mxu0 0.0
        %968 = vmatpush1.msra.mxu0 %v922
        %969 = vmatprep.subr.mxu0 0.0
        %970 = vmatpush2.msra.mxu0 0.0
        %971 = vmatprep.subr.mxu0 0.0
        %972 = vmatpush2.msra.mxu0 0.0
        %973 = vmatprep.subr.mxu0 0.0
        %974 = vmatpush2.msra.mxu0 0.0
        %975 = vmatprep.subr.mxu0 0.0
        %976 = vmatpush2.msra.mxu0 0.0
        %977 = vmatprep.subr.mxu0 0.0
        %978 = vmatpush2.msra.mxu0 0.0
        %979 = vmatprep.subr.mxu0 0.0
        %980 = vmatpush2.msra.mxu0 0.0
        %981 = vmatprep.subr.mxu0 0.0
        %982 = vmatpush2.msra.mxu0 0.0
        %983 = vmatprep.subr.mxu0 0.0
        %984 = vmatpush2.msra.mxu0 0.0
        %985 = vmatprep.subr.mxu0 0.0
        %986 = vmatpush2.msra.mxu0 0.0
        %987 = vmatprep.subr.mxu0 0.0
        %988 = vmatpush2.msra.mxu0 0.0
        %989 = vmatprep.subr.mxu0 0.0
        %990 = vmatpush2.msra.mxu0 0.0
        %991 = vmatprep.subr.mxu0 0.0
        %992 = vmatpush2.msra.mxu0 0.0
        %993 = vmatprep.subr.mxu0 0.0
        %994 = vmatpush2.msra.mxu0 0.0
        %995 = vmatprep.subr.mxu0 0.0
        %996 = vmatpush2.msra.mxu0 0.0
        %997 = vmatprep.subr.mxu0 0.0
        %998 = vmatpush2.msra.mxu0 0.0
        %999 = vmatprep.subr.mxu0 0.0
        %1000 = vmatpush2.msra.mxu0 0.0
        %1001 = vmatprep.mubr.f32.mxu0 0.0
        %1002 = vmatmul.mubr.f32.gmra.mxu0 %v935
        %v1003 = vpop.f32.mrf.mxu0
        %v1004 = vadd.f32 %v931, %v1003
        %v1005 = vpop.f32.mrf.mxu0
        %1006 = vdwg.mxu0
        %1008 = vrot.lane.b32.xlu0 %v1004, 96
        %v1009 = vpop.permute.xlu0 %1008
        %vm1010 = vcmask 130048
        %v1011 = vsel %vm1010, %v1004, 0
        %v1013 = vsel %vm1010, %v1009, 0
        %1015 = vmatprep.subr.mxu0 0.0
        %1016 = vmatpush1.xpose.msra.mxu0 0.0
        %1017 = vmatprep.subr.mxu0 0.0
        %1018 = vmatpush1.xpose.msra.mxu0 0.0
        %1019 = vmatprep.subr.mxu0 0.0
        %1020 = vmatpush1.xpose.msra.mxu0 0.0
        %1021 = vmatprep.subr.mxu0 0.0
        %1022 = vmatpush1.xpose.msra.mxu0 0.0
        %1023 = vmatprep.subr.mxu0 0.0
        %1024 = vmatpush1.xpose.msra.mxu0 0.0
        %1025 = vmatprep.subr.mxu0 0.0
        %1026 = vmatpush1.xpose.msra.mxu0 0.0
        %1027 = vmatprep.subr.mxu0 0.0
        %1028 = vmatpush1.xpose.msra.mxu0 0.0
        %1029 = vmatprep.subr.mxu0 0.0
        %1030 = vmatpush1.xpose.msra.mxu0 0.0
        %1031 = vmatprep.subr.mxu0 0.0
        %1032 = vmatpush1.xpose.msra.mxu0 0.0
        %1033 = vmatprep.subr.mxu0 0.0
        %1034 = vmatpush1.xpose.msra.mxu0 0.0
        %1035 = vmatprep.subr.mxu0 0.0
        %1036 = vmatpush1.xpose.msra.mxu0 0.0
        %1037 = vmatprep.subr.mxu0 0.0
        %1038 = vmatpush1.xpose.msra.mxu0 0.0
        %1039 = vmatprep.subr.mxu0 0.0
        %1040 = vmatpush1.xpose.msra.mxu0 0.0
        %1041 = vmatprep.subr.mxu0 0.0
        %1042 = vmatpush1.xpose.msra.mxu0 0.0
        %1043 = vmatprep.subr.mxu0 0.0
        %1044 = vmatpush1.xpose.msra.mxu0 0.0
        %1045 = vmatprep.subr.mxu0 0.0
        %1046 = vmatpush1.xpose.msra.mxu0 %v1013
        %1047 = vmatprep.subr.mxu0 0.0
        %1048 = vmatpush2.xpose.msra.mxu0 0.0
        %1049 = vmatprep.subr.mxu0 0.0
        %1050 = vmatpush2.xpose.msra.mxu0 0.0
        %1051 = vmatprep.subr.mxu0 0.0
        %1052 = vmatpush2.xpose.msra.mxu0 0.0
        %1053 = vmatprep.subr.mxu0 0.0
        %1054 = vmatpush2.xpose.msra.mxu0 0.0
        %1055 = vmatprep.subr.mxu0 0.0
        %1056 = vmatpush2.xpose.msra.mxu0 0.0
        %1057 = vmatprep.subr.mxu0 0.0
        %1058 = vmatpush2.xpose.msra.mxu0 0.0
        %1059 = vmatprep.subr.mxu0 0.0
        %1060 = vmatpush2.xpose.msra.mxu0 0.0
        %1061 = vmatprep.subr.mxu0 0.0
        %1062 = vmatpush2.xpose.msra.mxu0 0.0
        %1063 = vmatprep.subr.mxu0 0.0
        %1064 = vmatpush2.xpose.msra.mxu0 0.0
        %1065 = vmatprep.subr.mxu0 0.0
        %1066 = vmatpush2.xpose.msra.mxu0 0.0
        %1067 = vmatprep.subr.mxu0 0.0
        %1068 = vmatpush2.xpose.msra.mxu0 0.0
        %1069 = vmatprep.subr.mxu0 0.0
        %1070 = vmatpush2.xpose.msra.mxu0 0.0
        %1071 = vmatprep.subr.mxu0 0.0
        %1072 = vmatpush2.xpose.msra.mxu0 0.0
        %1073 = vmatprep.subr.mxu0 0.0
        %1074 = vmatpush2.xpose.msra.mxu0 0.0
        %1075 = vmatprep.subr.mxu0 0.0
        %1076 = vmatpush2.xpose.msra.mxu0 0.0
        %1077 = vmatprep.subr.mxu0 0.0
        %1078 = vmatpush2.xpose.msra.mxu0 0.0
        %1079 = vmatprep.mubr.f32.mxu0 0.0
        %1080 = vmatmul.mubr.f32.gmra.mxu0 %v1011
        %v1081 = vpop.f32.mrf.mxu0
        %v1082 = vadd.f32 0.0, %v1081
        %v1083 = vpop.f32.mrf.mxu0
        %1084 = vdwg.mxu0
        %v1085 = vmul.f32 %v1082, 0.25
        %v1087 = vlaneseq
        %v1088 = vshrl.u32 %v1087, 7
        %v1089 = vsub.s32 0, %v1088
        %v1090 = vrot.slane %v921, %v1089
        %v1092 = vadd.f32 %v1085, %v1090
        %vm1093 = vcmask 64512
        %v1094 = vsel %vm1093, %v1092, -inf
        %1095 = vmax.xlane.f32.xlu0 %v1094
        %v1096 = vpop.xlane.xlu0 %1095
        %v1097 = vsub.f32 %v1092, %v1096
        %v1098 = vmul.f32 %v1097, 1.442695
        %v1099 = vpow.pop %v1098
        %v1100 = vsel %vm1093, %v1099, 0.0
        %1101 = vadd.xlane.f32.xlu0 %v1100
        %v1102 = vpop.xlane.xlu0 %1101
        %v1103 = vrcp.pop %v1102
        %v1104 = vmul.f32 %v1099, %v1103
        %1105 = vrot.lane.b32.xlu0 %v1004, 64
        %v1106 = vpop.permute.xlu0 %1105
        %v1109 = vsel %vm1093, %v1104, 0
        %1111 = vmatprep.subr.mxu0 0.0
        %1112 = vmatpush1.msra.mxu0 0.0
        %1113 = vmatprep.subr.mxu0 0.0
        %1114 = vmatpush1.msra.mxu0 0.0
        %1115 = vmatprep.subr.mxu0 0.0
        %1116 = vmatpush1.msra.mxu0 0.0
        %1117 = vmatprep.subr.mxu0 0.0
        %1118 = vmatpush1.msra.mxu0 0.0
        %1119 = vmatprep.subr.mxu0 0.0
        %1120 = vmatpush1.msra.mxu0 0.0
        %1121 = vmatprep.subr.mxu0 0.0
        %1122 = vmatpush1.msra.mxu0 0.0
        %1123 = vmatprep.subr.mxu0 0.0
        %1124 = vmatpush1.msra.mxu0 0.0
        %1125 = vmatprep.subr.mxu0 0.0
        %1126 = vmatpush1.msra.mxu0 0.0
        %1127 = vmatprep.subr.mxu0 0.0
        %1128 = vmatpush1.msra.mxu0 0.0
        %1129 = vmatprep.subr.mxu0 0.0
        %1130 = vmatpush1.msra.mxu0 0.0
        %1131 = vmatprep.subr.mxu0 0.0
        %1132 = vmatpush1.msra.mxu0 0.0
        %1133 = vmatprep.subr.mxu0 0.0
        %1134 = vmatpush1.msra.mxu0 0.0
        %1135 = vmatprep.subr.mxu0 0.0
        %1136 = vmatpush1.msra.mxu0 0.0
        %1137 = vmatprep.subr.mxu0 0.0
        %1138 = vmatpush1.msra.mxu0 0.0
        %1139 = vmatprep.subr.mxu0 0.0
        %1140 = vmatpush1.msra.mxu0 0.0
        %1141 = vmatprep.subr.mxu0 0.0
        %1142 = vmatpush1.msra.mxu0 %v1106
        %1143 = vmatprep.subr.mxu0 0.0
        %1144 = vmatpush2.msra.mxu0 0.0
        %1145 = vmatprep.subr.mxu0 0.0
        %1146 = vmatpush2.msra.mxu0 0.0
        %1147 = vmatprep.subr.mxu0 0.0
        %1148 = vmatpush2.msra.mxu0 0.0
        %1149 = vmatprep.subr.mxu0 0.0
        %1150 = vmatpush2.msra.mxu0 0.0
        %1151 = vmatprep.subr.mxu0 0.0
        %1152 = vmatpush2.msra.mxu0 0.0
        %1153 = vmatprep.subr.mxu0 0.0
        %1154 = vmatpush2.msra.mxu0 0.0
        %1155 = vmatprep.subr.mxu0 0.0
        %1156 = vmatpush2.msra.mxu0 0.0
        %1157 = vmatprep.subr.mxu0 0.0
        %1158 = vmatpush2.msra.mxu0 0.0
        %1159 = vmatprep.subr.mxu0 0.0
        %1160 = vmatpush2.msra.mxu0 0.0
        %1161 = vmatprep.subr.mxu0 0.0
        %1162 = vmatpush2.msra.mxu0 0.0
        %1163 = vmatprep.subr.mxu0 0.0
        %1164 = vmatpush2.msra.mxu0 0.0
        %1165 = vmatprep.subr.mxu0 0.0
        %1166 = vmatpush2.msra.mxu0 0.0
        %1167 = vmatprep.subr.mxu0 0.0
        %1168 = vmatpush2.msra.mxu0 0.0
        %1169 = vmatprep.subr.mxu0 0.0
        %1170 = vmatpush2.msra.mxu0 0.0
        %1171 = vmatprep.subr.mxu0 0.0
        %1172 = vmatpush2.msra.mxu0 0.0
        %1173 = vmatprep.subr.mxu0 0.0
        %1174 = vmatpush2.msra.mxu0 0.0
        %1175 = vmatprep.mubr.f32.mxu0 0.0
        %1176 = vmatmul.mubr.f32.gmra.mxu0 %v1109
        %v1177 = vpop.f32.mrf.mxu0
        %v1178 = vadd.f32 0.0, %v1177
        %v1179 = vpop.f32.mrf.mxu0
        %1180 = vdwg.mxu0
        %1181 = vrot.lane.b32.xlu0 %v1004, 112
        %v1182 = vpop.permute.xlu0 %1181
        %1183 = vrot.lane.b32.xlu0 %v1004, 80
        %v1184 = vpop.permute.xlu0 %1183
        %v1185 = vsel %vm1010, %v1182, 0
        %v1187 = vsel %vm1010, %v1184, 0
        %1189 = vmatprep.subr.mxu0 0.0
        %1190 = vmatpush1.xpose.msra.mxu0 0.0
        %1191 = vmatprep.subr.mxu0 0.0
        %1192 = vmatpush1.xpose.msra.mxu0 0.0
        %1193 = vmatprep.subr.mxu0 0.0
        %1194 = vmatpush1.xpose.msra.mxu0 0.0
        %1195 = vmatprep.subr.mxu0 0.0
        %1196 = vmatpush1.xpose.msra.mxu0 0.0
        %1197 = vmatprep.subr.mxu0 0.0
        %1198 = vmatpush1.xpose.msra.mxu0 0.0
        %1199 = vmatprep.subr.mxu0 0.0
        %1200 = vmatpush1.xpose.msra.mxu0 0.0
        %1201 = vmatprep.subr.mxu0 0.0
        %1202 = vmatpush1.xpose.msra.mxu0 0.0
        %1203 = vmatprep.subr.mxu0 0.0
        %1204 = vmatpush1.xpose.msra.mxu0 0.0
        %1205 = vmatprep.subr.mxu0 0.0
        %1206 = vmatpush1.xpose.msra.mxu0 0.0
        %1207 = vmatprep.subr.mxu0 0.0
        %1208 = vmatpush1.xpose.msra.mxu0 0.0
        %1209 = vmatprep.subr.mxu0 0.0
        %1210 = vmatpush1.xpose.msra.mxu0 0.0
        %1211 = vmatprep.subr.mxu0 0.0
        %1212 = vmatpush1.xpose.msra.mxu0 0.0
        %1213 = vmatprep.subr.mxu0 0.0
        %1214 = vmatpush1.xpose.msra.mxu0 0.0
        %1215 = vmatprep.subr.mxu0 0.0
        %1216 = vmatpush1.xpose.msra.mxu0 0.0
        %1217 = vmatprep.subr.mxu0 0.0
        %1218 = vmatpush1.xpose.msra.mxu0 0.0
        %1219 = vmatprep.subr.mxu0 0.0
        %1220 = vmatpush1.xpose.msra.mxu0 %v1187
        %1221 = vmatprep.subr.mxu0 0.0
        %1222 = vmatpush2.xpose.msra.mxu0 0.0
        %1223 = vmatprep.subr.mxu0 0.0
        %1224 = vmatpush2.xpose.msra.mxu0 0.0
        %1225 = vmatprep.subr.mxu0 0.0
        %1226 = vmatpush2.xpose.msra.mxu0 0.0
        %1227 = vmatprep.subr.mxu0 0.0
        %1228 = vmatpush2.xpose.msra.mxu0 0.0
        %1229 = vmatprep.subr.mxu0 0.0
        %1230 = vmatpush2.xpose.msra.mxu0 0.0
        %1231 = vmatprep.subr.mxu0 0.0
        %1232 = vmatpush2.xpose.msra.mxu0 0.0
        %1233 = vmatprep.subr.mxu0 0.0
        %1234 = vmatpush2.xpose.msra.mxu0 0.0
        %1235 = vmatprep.subr.mxu0 0.0
        %1236 = vmatpush2.xpose.msra.mxu0 0.0
        %1237 = vmatprep.subr.mxu0 0.0
        %1238 = vmatpush2.xpose.msra.mxu0 0.0
        %1239 = vmatprep.subr.mxu0 0.0
        %1240 = vmatpush2.xpose.msra.mxu0 0.0
        %1241 = vmatprep.subr.mxu0 0.0
        %1242 = vmatpush2.xpose.msra.mxu0 0.0
        %1243 = vmatprep.subr.mxu0 0.0
        %1244 = vmatpush2.xpose.msra.mxu0 0.0
        %1245 = vmatprep.subr.mxu0 0.0
        %1246 = vmatpush2.xpose.msra.mxu0 0.0
        %1247 = vmatprep.subr.mxu0 0.0
        %1248 = vmatpush2.xpose.msra.mxu0 0.0
        %1249 = vmatprep.subr.mxu0 0.0
        %1250 = vmatpush2.xpose.msra.mxu0 0.0
        %1251 = vmatprep.subr.mxu0 0.0
        %1252 = vmatpush2.xpose.msra.mxu0 0.0
        %1253 = vmatprep.mubr.f32.mxu0 0.0
        %1254 = vmatmul.mubr.f32.gmra.mxu0 %v1185
        %v1255 = vpop.f32.mrf.mxu0
        %v1256 = vadd.f32 0.0, %v1255
        %v1257 = vpop.f32.mrf.mxu0
        %1258 = vdwg.mxu0
        %v1259 = vmul.f32 %v1256, 0.25
        %v1260 = vadd.f32 %v1259, %v1090
        %v1261 = vsel %vm1093, %v1260, -inf
        %1262 = vmax.xlane.f32.xlu0 %v1261
        %v1263 = vpop.xlane.xlu0 %1262
        %v1264 = vsub.f32 %v1260, %v1263
        %v1265 = vmul.f32 %v1264, 1.442695
        %v1266 = vpow.pop %v1265
        %v1267 = vsel %vm1093, %v1266, 0.0
        %1268 = vadd.xlane.f32.xlu0 %v1267
        %v1269 = vpop.xlane.xlu0 %1268
        %v1270 = vrcp.pop %v1269
        %v1271 = vmul.f32 %v1266, %v1270
        %1272 = vrot.lane.b32.xlu0 %v1004, 48
        %v1273 = vpop.permute.xlu0 %1272
        %v1276 = vsel %vm1093, %v1271, 0
        %1278 = vmatprep.subr.mxu0 0.0
        %1279 = vmatpush1.msra.mxu0 0.0
        %1280 = vmatprep.subr.mxu0 0.0
        %1281 = vmatpush1.msra.mxu0 0.0
        %1282 = vmatprep.subr.mxu0 0.0
        %1283 = vmatpush1.msra.mxu0 0.0
        %1284 = vmatprep.subr.mxu0 0.0
        %1285 = vmatpush1.msra.mxu0 0.0
        %1286 = vmatprep.subr.mxu0 0.0
        %1287 = vmatpush1.msra.mxu0 0.0
        %1288 = vmatprep.subr.mxu0 0.0
        %1289 = vmatpush1.msra.mxu0 0.0
        %1290 = vmatprep.subr.mxu0 0.0
        %1291 = vmatpush1.msra.mxu0 0.0
        %1292 = vmatprep.subr.mxu0 0.0
        %1293 = vmatpush1.msra.mxu0 0.0
        %1294 = vmatprep.subr.mxu0 0.0
        %1295 = vmatpush1.msra.mxu0 0.0
        %1296 = vmatprep.subr.mxu0 0.0
        %1297 = vmatpush1.msra.mxu0 0.0
        %1298 = vmatprep.subr.mxu0 0.0
        %1299 = vmatpush1.msra.mxu0 0.0
        %1300 = vmatprep.subr.mxu0 0.0
        %1301 = vmatpush1.msra.mxu0 0.0
        %1302 = vmatprep.subr.mxu0 0.0
        %1303 = vmatpush1.msra.mxu0 0.0
        %1304 = vmatprep.subr.mxu0 0.0
        %1305 = vmatpush1.msra.mxu0 0.0
        %1306 = vmatprep.subr.mxu0 0.0
        %1307 = vmatpush1.msra.mxu0 0.0
        %1308 = vmatprep.subr.mxu0 0.0
        %1309 = vmatpush1.msra.mxu0 %v1273
        %1310 = vmatprep.subr.mxu0 0.0
        %1311 = vmatpush2.msra.mxu0 0.0
        %1312 = vmatprep.subr.mxu0 0.0
        %1313 = vmatpush2.msra.mxu0 0.0
        %1314 = vmatprep.subr.mxu0 0.0
        %1315 = vmatpush2.msra.mxu0 0.0
        %1316 = vmatprep.subr.mxu0 0.0
        %1317 = vmatpush2.msra.mxu0 0.0
        %1318 = vmatprep.subr.mxu0 0.0
        %1319 = vmatpush2.msra.mxu0 0.0
        %1320 = vmatprep.subr.mxu0 0.0
        %1321 = vmatpush2.msra.mxu0 0.0
        %1322 = vmatprep.subr.mxu0 0.0
        %1323 = vmatpush2.msra.mxu0 0.0
        %1324 = vmatprep.subr.mxu0 0.0
        %1325 = vmatpush2.msra.mxu0 0.0
        %1326 = vmatprep.subr.mxu0 0.0
        %1327 = vmatpush2.msra.mxu0 0.0
        %1328 = vmatprep.subr.mxu0 0.0
        %1329 = vmatpush2.msra.mxu0 0.0
        %1330 = vmatprep.subr.mxu0 0.0
        %1331 = vmatpush2.msra.mxu0 0.0
        %1332 = vmatprep.subr.mxu0 0.0
        %1333 = vmatpush2.msra.mxu0 0.0
        %1334 = vmatprep.subr.mxu0 0.0
        %1335 = vmatpush2.msra.mxu0 0.0
        %1336 = vmatprep.subr.mxu0 0.0
        %1337 = vmatpush2.msra.mxu0 0.0
        %1338 = vmatprep.subr.mxu0 0.0
        %1339 = vmatpush2.msra.mxu0 0.0
        %1340 = vmatprep.subr.mxu0 0.0
        %1341 = vmatpush2.msra.mxu0 0.0
        %1342 = vmatprep.mubr.f32.mxu0 0.0
        %1343 = vmatmul.mubr.f32.gmra.mxu0 %v1276
        %v1344 = vpop.f32.mrf.mxu0
        %v1345 = vadd.f32 0.0, %v1344
        %v1346 = vpop.f32.mrf.mxu0
        %1347 = vdwg.mxu0
        %1349 = vrot.lane.b32.xlu0 %v1345, 16
        %v1350 = vpop.permute.xlu0 %1349
        %v1352 = vsel %vm1010, %v1178, %v1350
        %v1353 = vld [vmem:[%s848] sm:$0xff]
        %v1354 = vld [vmem:[%s848 + $0x8] sm:$0xff]
        %v1355 = vld [vmem:[%s848 + $0x10] sm:$0xff]
        %v1356 = vld [vmem:[%s848 + $0x18] sm:$0xff]
        %v1357 = vld [vmem:[%s851] sm:$0x1]
        %v1359 = vlaneseq
        %v1360 = vshrl.u32 %v1359, 7
        %v1361 = vsub.s32 0, %v1360
        %v1362 = vrot.slane %v1357, %v1361
        %v1365 = vsel %vm933, %v1352, 0
        %1367 = vmatprep.subr.mxu0 0.0
        %1368 = vmatpush1.msra.mxu0 0.0
        %1369 = vmatprep.subr.mxu0 0.0
        %1370 = vmatpush1.msra.mxu0 0.0
        %1371 = vmatprep.subr.mxu0 0.0
        %1372 = vmatpush1.msra.mxu0 0.0
        %1373 = vmatprep.subr.mxu0 0.0
        %1374 = vmatpush1.msra.mxu0 0.0
        %1375 = vmatprep.subr.mxu0 0.0
        %1376 = vmatpush1.msra.mxu0 0.0
        %1377 = vmatprep.subr.mxu0 0.0
        %1378 = vmatpush1.msra.mxu0 0.0
        %1379 = vmatprep.subr.mxu0 0.0
        %1380 = vmatpush1.msra.mxu0 0.0
        %1381 = vmatprep.subr.mxu0 0.0
        %1382 = vmatpush1.msra.mxu0 0.0
        %1383 = vmatprep.subr.mxu0 0.0
        %1384 = vmatpush1.msra.mxu0 0.0
        %1385 = vmatprep.subr.mxu0 0.0
        %1386 = vmatpush1.msra.mxu0 0.0
        %1387 = vmatprep.subr.mxu0 0.0
        %1388 = vmatpush1.msra.mxu0 0.0
        %1389 = vmatprep.subr.mxu0 0.0
        %1390 = vmatpush1.msra.mxu0 0.0
        %1391 = vmatprep.subr.mxu0 0.0
        %1392 = vmatpush1.msra.mxu0 %v1356
        %1393 = vmatprep.subr.mxu0 0.0
        %1394 = vmatpush1.msra.mxu0 %v1355
        %1395 = vmatprep.subr.mxu0 0.0
        %1396 = vmatpush1.msra.mxu0 %v1354
        %1397 = vmatprep.subr.mxu0 0.0
        %1398 = vmatpush1.msra.mxu0 %v1353
        %1399 = vmatprep.subr.mxu0 0.0
        %1400 = vmatpush2.msra.mxu0 0.0
        %1401 = vmatprep.subr.mxu0 0.0
        %1402 = vmatpush2.msra.mxu0 0.0
        %1403 = vmatprep.subr.mxu0 0.0
        %1404 = vmatpush2.msra.mxu0 0.0
        %1405 = vmatprep.subr.mxu0 0.0
        %1406 = vmatpush2.msra.mxu0 0.0
        %1407 = vmatprep.subr.mxu0 0.0
        %1408 = vmatpush2.msra.mxu0 0.0
        %1409 = vmatprep.subr.mxu0 0.0
        %1410 = vmatpush2.msra.mxu0 0.0
        %1411 = vmatprep.subr.mxu0 0.0
        %1412 = vmatpush2.msra.mxu0 0.0
        %1413 = vmatprep.subr.mxu0 0.0
        %1414 = vmatpush2.msra.mxu0 0.0
        %1415 = vmatprep.subr.mxu0 0.0
        %1416 = vmatpush2.msra.mxu0 0.0
        %1417 = vmatprep.subr.mxu0 0.0
        %1418 = vmatpush2.msra.mxu0 0.0
        %1419 = vmatprep.subr.mxu0 0.0
        %1420 = vmatpush2.msra.mxu0 0.0
        %1421 = vmatprep.subr.mxu0 0.0
        %1422 = vmatpush2.msra.mxu0 0.0
        %1423 = vmatprep.subr.mxu0 0.0
        %1424 = vmatpush2.msra.mxu0 0.0
        %1425 = vmatprep.subr.mxu0 0.0
        %1426 = vmatpush2.msra.mxu0 0.0
        %1427 = vmatprep.subr.mxu0 0.0
        %1428 = vmatpush2.msra.mxu0 0.0
        %1429 = vmatprep.subr.mxu0 0.0
        %1430 = vmatpush2.msra.mxu0 0.0
        %1431 = vmatprep.mubr.f32.mxu0 0.0
        %1432 = vmatmul.mubr.f32.gmra.mxu0 %v1365
        %v1433 = vpop.f32.mrf.mxu0
        %v1434 = vadd.f32 %v1362, %v1433
        %v1435 = vpop.f32.mrf.mxu0
        %1436 = vdwg.mxu0
        %v1437 = vadd.f32 %v1434, %v920
        %v1438 = vld [vmem:[%s854] sm:$0x1]
        %v1439 = vld [vmem:[%s857] sm:$0x1]
        %v1440 = vsel %vm933, %v1437, 0.0
        %1441 = vadd.xlane.f32.xlu0 %v1440
        %v1442 = vpop.xlane.xlu0 %1441
        %v1443 = vrcp.pop 32.0
        %v1444 = vmul.f32 %v1442, %v1443
        %v1445 = vsub.f32 %v1437, %v1444
        %v1446 = vmul.f32 %v1445, %v1445
        %v1447 = vsel %vm933, %v1446, 0.0
        %1448 = vadd.xlane.f32.xlu0 %v1447
        %v1449 = vpop.xlane.xlu0 %1448
        %v1450 = vmul.f32 %v1449, %v1443
        %v1451 = vadd.f32 %v1450, 1e-12
        %v1452 = vrsqrt.pop %v1451
        %v1453 = vmul.f32 %v1445, %v1452
        %v1455 = vlaneseq
        %v1456 = vshrl.u32 %v1455, 7
        %v1457 = vsub.s32 0, %v1456
        %v1458 = vrot.slane %v1438, %v1457
        %v1460 = vmul.f32 %v1453, %v1458
        %v1462 = vlaneseq
        %v1463 = vshrl.u32 %v1462, 7
        %v1464 = vsub.s32 0, %v1463
        %v1465 = vrot.slane %v1439, %v1464
        %v1467 = vadd.f32 %v1460, %v1465
        %v1468 = vld [vmem:[%s862] sm:$0xff]
        %v1469 = vld [vmem:[%s862 + $0x8] sm:$0xff]
        %v1470 = vld [vmem:[%s862 + $0x10] sm:$0xff]
        %v1471 = vld [vmem:[%s862 + $0x18] sm:$0xff]
        %v1472 = vld [vmem:[%s865] sm:$0x1]
        %v1474 = vlaneseq
        %v1475 = vshrl.u32 %v1474, 7
        %v1476 = vsub.s32 0, %v1475
        %v1477 = vrot.slane %v1472, %v1476
        %v1480 = vsel %vm933, %v1467, 0
        %1482 = vmatprep.subr.mxu0 0.0
        %1483 = vmatpush1.msra.mxu0 0.0
        %1484 = vmatprep.subr.mxu0 0.0
        %1485 = vmatpush1.msra.mxu0 0.0
        %1486 = vmatprep.subr.mxu0 0.0
        %1487 = vmatpush1.msra.mxu0 0.0
        %1488 = vmatprep.subr.mxu0 0.0
        %1489 = vmatpush1.msra.mxu0 0.0
        %1490 = vmatprep.subr.mxu0 0.0
        %1491 = vmatpush1.msra.mxu0 0.0
        %1492 = vmatprep.subr.mxu0 0.0
        %1493 = vmatpush1.msra.mxu0 0.0
        %1494 = vmatprep.subr.mxu0 0.0
        %1495 = vmatpush1.msra.mxu0 0.0
        %1496 = vmatprep.subr.mxu0 0.0
        %1497 = vmatpush1.msra.mxu0 0.0
        %1498 = vmatprep.subr.mxu0 0.0
        %1499 = vmatpush1.msra.mxu0 0.0
        %1500 = vmatprep.subr.mxu0 0.0
        %1501 = vmatpush1.msra.mxu0 0.0
        %1502 = vmatprep.subr.mxu0 0.0
        %1503 = vmatpush1.msra.mxu0 0.0
        %1504 = vmatprep.subr.mxu0 0.0
        %1505 = vmatpush1.msra.mxu0 0.0
        %1506 = vmatprep.subr.mxu0 0.0
        %1507 = vmatpush1.msra.mxu0 %v1471
        %1508 = vmatprep.subr.mxu0 0.0
        %1509 = vmatpush1.msra.mxu0 %v1470
        %1510 = vmatprep.subr.mxu0 0.0
        %1511 = vmatpush1.msra.mxu0 %v1469
        %1512 = vmatprep.subr.mxu0 0.0
        %1513 = vmatpush1.msra.mxu0 %v1468
        %1514 = vmatprep.subr.mxu0 0.0
        %1515 = vmatpush2.msra.mxu0 0.0
        %1516 = vmatprep.subr.mxu0 0.0
        %1517 = vmatpush2.msra.mxu0 0.0
        %1518 = vmatprep.subr.mxu0 0.0
        %1519 = vmatpush2.msra.mxu0 0.0
        %1520 = vmatprep.subr.mxu0 0.0
        %1521 = vmatpush2.msra.mxu0 0.0
        %1522 = vmatprep.subr.mxu0 0.0
        %1523 = vmatpush2.msra.mxu0 0.0
        %1524 = vmatprep.subr.mxu0 0.0
        %1525 = vmatpush2.msra.mxu0 0.0
        %1526 = vmatprep.subr.mxu0 0.0
        %1527 = vmatpush2.msra.mxu0 0.0
        %1528 = vmatprep.subr.mxu0 0.0
        %1529 = vmatpush2.msra.mxu0 0.0
        %1530 = vmatprep.subr.mxu0 0.0
        %1531 = vmatpush2.msra.mxu0 0.0
        %1532 = vmatprep.subr.mxu0 0.0
        %1533 = vmatpush2.msra.mxu0 0.0
        %1534 = vmatprep.subr.mxu0 0.0
        %1535 = vmatpush2.msra.mxu0 0.0
        %1536 = vmatprep.subr.mxu0 0.0
        %1537 = vmatpush2.msra.mxu0 0.0
        %1538 = vmatprep.subr.mxu0 0.0
        %1539 = vmatpush2.msra.mxu0 0.0
        %1540 = vmatprep.subr.mxu0 0.0
        %1541 = vmatpush2.msra.mxu0 0.0
        %1542 = vmatprep.subr.mxu0 0.0
        %1543 = vmatpush2.msra.mxu0 0.0
        %1544 = vmatprep.subr.mxu0 0.0
        %1545 = vmatpush2.msra.mxu0 0.0
        %1546 = vmatprep.mubr.f32.mxu0 0.0
        %1547 = vmatmul.mubr.f32.gmra.mxu0 %v1480
        %v1548 = vpop.f32.mrf.mxu0
        %v1549 = vadd.f32 %v1477, %v1548
        %v1550 = vpop.f32.mrf.mxu0
        %1551 = vdwg.mxu0
        %v1552 = vmul.f32 %v1549, %v1549
        %v1553 = vmul.f32 %v1549, %v1552
        %v1554 = vmul.f32 %v1553, 0.044715
        %v1555 = vadd.f32 %v1549, %v1554
        %v1556 = vmul.f32 %v1555, 0.7978846
        %v1557 = vtanh.pop %v1556
        %v1558 = vadd.f32 %v1557, 1.0
        %v1559 = vmul.f32 %v1558, 0.5
        %v1560 = vmul.f32 %v1549, %v1559
        %v1561 = vld [vmem:[%s870] sm:$0xff]
        %v1562 = vld [vmem:[%s870 + $0x8] sm:$0xff]
        %v1563 = vld [vmem:[%s870 + $0x10] sm:$0xff]
        %v1564 = vld [vmem:[%s870 + $0x18] sm:$0xff]
        %v1565 = vld [vmem:[%s870 + $0x20] sm:$0xff]
        %v1566 = vld [vmem:[%s870 + $0x28] sm:$0xff]
        %v1567 = vld [vmem:[%s870 + $0x30] sm:$0xff]
        %v1568 = vld [vmem:[%s870 + $0x38] sm:$0xff]
        %v1569 = vld [vmem:[%s873] sm:$0x1]
        %v1571 = vlaneseq
        %v1572 = vshrl.u32 %v1571, 7
        %v1573 = vsub.s32 0, %v1572
        %v1574 = vrot.slane %v1569, %v1573
        %vm1576 = vcmask 523264
        %v1578 = vsel %vm1576, %v1560, 0
        %1580 = vmatprep.subr.mxu0 0.0
        %1581 = vmatpush1.msra.mxu0 0.0
        %1582 = vmatprep.subr.mxu0 0.0
        %1583 = vmatpush1.msra.mxu0 0.0
        %1584 = vmatprep.subr.mxu0 0.0
        %1585 = vmatpush1.msra.mxu0 0.0
        %1586 = vmatprep.subr.mxu0 0.0
        %1587 = vmatpush1.msra.mxu0 0.0
        %1588 = vmatprep.subr.mxu0 0.0
        %1589 = vmatpush1.msra.mxu0 0.0
        %1590 = vmatprep.subr.mxu0 0.0
        %1591 = vmatpush1.msra.mxu0 0.0
        %1592 = vmatprep.subr.mxu0 0.0
        %1593 = vmatpush1.msra.mxu0 0.0
        %1594 = vmatprep.subr.mxu0 0.0
        %1595 = vmatpush1.msra.mxu0 0.0
        %1596 = vmatprep.subr.mxu0 0.0
        %1597 = vmatpush1.msra.mxu0 %v1568
        %1598 = vmatprep.subr.mxu0 0.0
        %1599 = vmatpush1.msra.mxu0 %v1567
        %1600 = vmatprep.subr.mxu0 0.0
        %1601 = vmatpush1.msra.mxu0 %v1566
        %1602 = vmatprep.subr.mxu0 0.0
        %1603 = vmatpush1.msra.mxu0 %v1565
        %1604 = vmatprep.subr.mxu0 0.0
        %1605 = vmatpush1.msra.mxu0 %v1564
        %1606 = vmatprep.subr.mxu0 0.0
        %1607 = vmatpush1.msra.mxu0 %v1563
        %1608 = vmatprep.subr.mxu0 0.0
        %1609 = vmatpush1.msra.mxu0 %v1562
        %1610 = vmatprep.subr.mxu0 0.0
        %1611 = vmatpush1.msra.mxu0 %v1561
        %1612 = vmatprep.subr.mxu0 0.0
        %1613 = vmatpush2.msra.mxu0 0.0
        %1614 = vmatprep.subr.mxu0 0.0
        %1615 = vmatpush2.msra.mxu0 0.0
        %1616 = vmatprep.subr.mxu0 0.0
        %1617 = vmatpush2.msra.mxu0 0.0
        %1618 = vmatprep.subr.mxu0 0.0
        %1619 = vmatpush2.msra.mxu0 0.0
        %1620 = vmatprep.subr.mxu0 0.0
        %1621 = vmatpush2.msra.mxu0 0.0
        %1622 = vmatprep.subr.mxu0 0.0
        %1623 = vmatpush2.msra.mxu0 0.0
        %1624 = vmatprep.subr.mxu0 0.0
        %1625 = vmatpush2.msra.mxu0 0.0
        %1626 = vmatprep.subr.mxu0 0.0
        %1627 = vmatpush2.msra.mxu0 0.0
        %1628 = vmatprep.subr.mxu0 0.0
        %1629 = vmatpush2.msra.mxu0 0.0
        %1630 = vmatprep.subr.mxu0 0.0
        %1631 = vmatpush2.msra.mxu0 0.0
        %1632 = vmatprep.subr.mxu0 0.0
        %1633 = vmatpush2.msra.mxu0 0.0
        %1634 = vmatprep.subr.mxu0 0.0
        %1635 = vmatpush2.msra.mxu0 0.0
        %1636 = vmatprep.subr.mxu0 0.0
        %1637 = vmatpush2.msra.mxu0 0.0
        %1638 = vmatprep.subr.mxu0 0.0
        %1639 = vmatpush2.msra.mxu0 0.0
        %1640 = vmatprep.subr.mxu0 0.0
        %1641 = vmatpush2.msra.mxu0 0.0
        %1642 = vmatprep.subr.mxu0 0.0
        %1643 = vmatpush2.msra.mxu0 0.0
        %1644 = vmatprep.mubr.f32.mxu0 0.0
        %1645 = vmatmul.mubr.f32.gmra.mxu0 %v1578
        %v1646 = vpop.f32.mrf.mxu0
        %v1647 = vadd.f32 %v1574, %v1646
        %v1648 = vpop.f32.mrf.mxu0
        %1649 = vdwg.mxu0
        %v1650 = vadd.f32 %v1647, %v1467
        %v1651 = vld [vmem:[%s876] sm:$0x1]
        %v1652 = vld [vmem:[%s879] sm:$0x1]
        %v1653 = vsel %vm933, %v1650, 0.0
        %1654 = vadd.xlane.f32.xlu0 %v1653
        %v1655 = vpop.xlane.xlu0 %1654
        %v1656 = vmul.f32 %v1655, %v1443
        %v1657 = vsub.f32 %v1650, %v1656
        %v1658 = vmul.f32 %v1657, %v1657
        %v1659 = vsel %vm933, %v1658, 0.0
        %1660 = vadd.xlane.f32.xlu0 %v1659
        %v1661 = vpop.xlane.xlu0 %1660
        %v1662 = vmul.f32 %v1661, %v1443
        %v1663 = vadd.f32 %v1662, 1e-12
        %v1664 = vrsqrt.pop %v1663
        %v1665 = vmul.f32 %v1657, %v1664
        %v1667 = vlaneseq
        %v1668 = vshrl.u32 %v1667, 7
        %v1669 = vsub.s32 0, %v1668
        %v1670 = vrot.slane %v1651, %v1669
        %v1672 = vmul.f32 %v1665, %v1670
        %v1674 = vlaneseq
        %v1675 = vshrl.u32 %v1674, 7
        %v1676 = vsub.s32 0, %v1675
        %v1677 = vrot.slane %v1652, %v1676
        %v1679 = vadd.f32 %v1672, %v1677
        %1680 = vst.msk [vmem:[#allocation2] sm:$0xff] %vm933, %v1679
        %p1681 = scmp.eq.s32.totalorder %s40, 1
        // Predicated region
        $region109: #{bert_with_numeric_forward.1} parent=103 // pred_check
          %p1682 = pneg %p1681
        $region110: #{bert_with_numeric_forward.1} parent=103 // pred_check_branch
          %1684 = sbr.rel (%p1682) target = $region112
        $region111: #{bert_with_numeric_forward.1} parent=103 // pred_region
          %v1685 = vld [vmem:[%s882] sm:$0x1]
          %v1686 = vld [vmem:[%s17] sm:$0xff]
          %v1687 = vld [vmem:[%s17 + $0x8] sm:$0xff]
          %v1688 = vld [vmem:[%s18] sm:$0x1]
          %v1690 = vsel %vm1010, %v1685, 0
          %1692 = vmatprep.subr.mxu0 0.0
          %1693 = vmatpush1.msra.mxu0 0.0
          %1694 = vmatprep.subr.mxu0 0.0
          %1695 = vmatpush1.msra.mxu0 0.0
          %1696 = vmatprep.subr.mxu0 0.0
          %1697 = vmatpush1.msra.mxu0 0.0
          %1698 = vmatprep.subr.mxu0 0.0
          %1699 = vmatpush1.msra.mxu0 0.0
          %1700 = vmatprep.subr.mxu0 0.0
          %1701 = vmatpush1.msra.mxu0 0.0
          %1702 = vmatprep.subr.mxu0 0.0
          %1703 = vmatpush1.msra.mxu0 0.0
          %1704 = vmatprep.subr.mxu0 0.0
          %1705 = vmatpush1.msra.mxu0 0.0
          %1706 = vmatprep.subr.mxu0 0.0
          %1707 = vmatpush1.msra.mxu0 0.0
          %1708 = vmatprep.subr.mxu0 0.0
          %1709 = vmatpush1.msra.mxu0 0.0
          %1710 = vmatprep.subr.mxu0 0.0
          %1711 = vmatpush1.msra.mxu0 0.0
          %1712 = vmatprep.subr.mxu0 0.0
          %1713 = vmatpush1.msra.mxu0 0.0
          %1714 = vmatprep.subr.mxu0 0.0
          %1715 = vmatpush1.msra.mxu0 0.0
          %1716 = vmatprep.subr.mxu0 0.0
          %1717 = vmatpush1.msra.mxu0 0.0
          %1718 = vmatprep.subr.mxu0 0.0
          %1719 = vmatpush1.msra.mxu0 0.0
          %1720 = vmatprep.subr.mxu0 0.0
          %1721 = vmatpush1.msra.mxu0 %v1687
          %1722 = vmatprep.subr.mxu0 0.0
          %1723 = vmatpush1.msra.mxu0 %v1686
          %1724 = vmatprep.subr.mxu0 0.0
          %1725 = vmatpush2.msra.mxu0 0.0
          %1726 = vmatprep.subr.mxu0 0.0
          %1727 = vmatpush2.msra.mxu0 0.0
          %1728 = vmatprep.subr.mxu0 0.0
          %1729 = vmatpush2.msra.mxu0 0.0
          %1730 = vmatprep.subr.mxu0 0.0
          %1731 = vmatpush2.msra.mxu0 0.0
          %1732 = vmatprep.subr.mxu0 0.0
          %1733 = vmatpush2.msra.mxu0 0.0
          %1734 = vmatprep.subr.mxu0 0.0
          %1735 = vmatpush2.msra.mxu0 0.0
          %1736 = vmatprep.subr.mxu0 0.0
          %1737 = vmatpush2.msra.mxu0 0.0
          %1738 = vmatprep.subr.mxu0 0.0
          %1739 = vmatpush2.msra.mxu0 0.0
          %1740 = vmatprep.subr.mxu0 0.0
          %1741 = vmatpush2.msra.mxu0 0.0
          %1742 = vmatprep.subr.mxu0 0.0
          %1743 = vmatpush2.msra.mxu0 0.0
          %1744 = vmatprep.subr.mxu0 0.0
          %1745 = vmatpush2.msra.mxu0 0.0
          %1746 = vmatprep.subr.mxu0 0.0
          %1747 = vmatpush2.msra.mxu0 0.0
          %1748 = vmatprep.subr.mxu0 0.0
          %1749 = vmatpush2.msra.mxu0 0.0
          %1750 = vmatprep.subr.mxu0 0.0
          %1751 = vmatpush2.msra.mxu0 0.0
          %1752 = vmatprep.subr.mxu0 0.0
          %1753 = vmatpush2.msra.mxu0 0.0
          %1754 = vmatprep.subr.mxu0 0.0
          %1755 = vmatpush2.msra.mxu0 0.0
          %1756 = vmatprep.mubr.f32.mxu0 0.0
          %1757 = vmatmul.mubr.f32.gmra.mxu0 %v1690
          %v1758 = vpop.f32.mrf.mxu0
          %v1759 = vadd.f32 %v1688, %v1758
          %v1760 = vpop.f32.mrf.mxu0
          %1761 = vdwg.mxu0
          %v1762 = vld [vmem:[%s19] sm:$0xff]
          %v1763 = vld [vmem:[%s19 + $0x8] sm:$0xff]
          %v1764 = vld [vmem:[%s19 + $0x10] sm:$0xff]
          %v1765 = vld [vmem:[%s19 + $0x18] sm:$0xff]
          %v1766 = vld [vmem:[%s19 + $0x20] sm:$0xff]
          %v1767 = vld [vmem:[%s19 + $0x28] sm:$0xff]
          %v1768 = vld [vmem:[%s19 + $0x30] sm:$0xff]
          %v1769 = vld [vmem:[%s19 + $0x38] sm:$0xff]
          %v1771 = vsel %vm933, %v1759, 0
          %1773 = vmatprep.subr.mxu0 0.0
          %1774 = vmatpush1.msra.mxu0 0.0
          %1775 = vmatprep.subr.mxu0 0.0
          %1776 = vmatpush1.msra.mxu0 0.0
          %1777 = vmatprep.subr.mxu0 0.0
          %1778 = vmatpush1.msra.mxu0 0.0
          %1779 = vmatprep.subr.mxu0 0.0
          %1780 = vmatpush1.msra.mxu0 0.0
          %1781 = vmatprep.subr.mxu0 0.0
          %1782 = vmatpush1.msra.mxu0 0.0
          %1783 = vmatprep.subr.mxu0 0.0
          %1784 = vmatpush1.msra.mxu0 0.0
          %1785 = vmatprep.subr.mxu0 0.0
          %1786 = vmatpush1.msra.mxu0 0.0
          %1787 = vmatprep.subr.mxu0 0.0
          %1788 = vmatpush1.msra.mxu0 0.0
          %1789 = vmatprep.subr.mxu0 0.0
          %1790 = vmatpush1.msra.mxu0 0.0
          %1791 = vmatprep.subr.mxu0 0.0
          %1792 = vmatpush1.msra.mxu0 0.0
          %1793 = vmatprep.subr.mxu0 0.0
          %1794 = vmatpush1.msra.mxu0 0.0
          %1795 = vmatprep.subr.mxu0 0.0
          %1796 = vmatpush1.msra.mxu0 0.0
          %1797 = vmatprep.subr.mxu0 0.0
          %1798 = vmatpush1.msra.mxu0 %v1769
          %1799 = vmatprep.subr.mxu0 0.0
          %1800 = vmatpush1.msra.mxu0 %v1768
          %1801 = vmatprep.subr.mxu0 0.0
          %1802 = vmatpush1.msra.mxu0 %v1767
          %1803 = vmatprep.subr.mxu0 0.0
          %1804 = vmatpush1.msra.mxu0 %v1766
          %1805 = vmatprep.subr.mxu0 0.0
          %1806 = vmatpush2.msra.mxu0 0.0
          %1807 = vmatprep.subr.mxu0 0.0
          %1808 = vmatpush2.msra.mxu0 0.0
          %1809 = vmatprep.subr.mxu0 0.0
          %1810 = vmatpush2.msra.mxu0 0.0
          %1811 = vmatprep.subr.mxu0 0.0
          %1812 = vmatpush2.msra.mxu0 0.0
          %1813 = vmatprep.subr.mxu0 0.0
          %1814 = vmatpush2.msra.mxu0 0.0
          %1815 = vmatprep.subr.mxu0 0.0
          %1816 = vmatpush2.msra.mxu0 0.0
          %1817 = vmatprep.subr.mxu0 0.0
          %1818 = vmatpush2.msra.mxu0 0.0
          %1819 = vmatprep.subr.mxu0 0.0
          %1820 = vmatpush2.msra.mxu0 0.0
          %1821 = vmatprep.subr.mxu0 0.0
          %1822 = vmatpush2.msra.mxu0 0.0
          %1823 = vmatprep.subr.mxu0 0.0
          %1824 = vmatpush2.msra.mxu0 0.0
          %1825 = vmatprep.subr.mxu0 0.0
          %1826 = vmatpush2.msra.mxu0 0.0
          %1827 = vmatprep.subr.mxu0 0.0
          %1828 = vmatpush2.msra.mxu0 0.0
          %1829 = vmatprep.subr.mxu0 0.0
          %1830 = vmatpush2.msra.mxu0 0.0
          %1831 = vmatprep.subr.mxu0 0.0
          %1832 = vmatpush2.msra.mxu0 0.0
          %1833 = vmatprep.subr.mxu0 0.0
          %1834 = vmatpush2.msra.mxu0 0.0
          %1835 = vmatprep.subr.mxu0 0.0
          %1836 = vmatpush2.msra.mxu0 0.0
          %1837 = vmatprep.mubr.f32.mxu0 0.0
          %1838 = vmatmul.mubr.f32.gmra.mxu0 %v1771
          %v1839 = vpop.f32.mrf.mxu0
          %v1840 = vadd.f32 0.0, %v1839
          %v1841 = vpop.f32.mrf.mxu0
          %1842 = vdwg.mxu0
          %v1844 = vsel %vm933, %v1679, 0
          %1846 = vmatprep.subr.mxu0 0.0
          %1847 = vmatpush1.msra.mxu0 0.0
          %1848 = vmatprep.subr.mxu0 0.0
          %1849 = vmatpush1.msra.mxu0 0.0
          %1850 = vmatprep.subr.mxu0 0.0
          %1851 = vmatpush1.msra.mxu0 0.0
          %1852 = vmatprep.subr.mxu0 0.0
          %1853 = vmatpush1.msra.mxu0 0.0
          %1854 = vmatprep.subr.mxu0 0.0
          %1855 = vmatpush1.msra.mxu0 0.0
          %1856 = vmatprep.subr.mxu0 0.0
          %1857 = vmatpush1.msra.mxu0 0.0
          %1858 = vmatprep.subr.mxu0 0.0
          %1859 = vmatpush1.msra.mxu0 0.0
          %1860 = vmatprep.subr.mxu0 0.0
          %1861 = vmatpush1.msra.mxu0 0.0
          %1862 = vmatprep.subr.mxu0 0.0
          %1863 = vmatpush1.msra.mxu0 0.0
          %1864 = vmatprep.subr.mxu0 0.0
          %1865 = vmatpush1.msra.mxu0 0.0
          %1866 = vmatprep.subr.mxu0 0.0
          %1867 = vmatpush1.msra.mxu0 0.0
          %1868 = vmatprep.subr.mxu0 0.0
          %1869 = vmatpush1.msra.mxu0 0.0
          %1870 = vmatprep.subr.mxu0 0.0
          %1871 = vmatpush1.msra.mxu0 %v1765
          %1872 = vmatprep.subr.mxu0 0.0
          %1873 = vmatpush1.msra.mxu0 %v1764
          %1874 = vmatprep.subr.mxu0 0.0
          %1875 = vmatpush1.msra.mxu0 %v1763
          %1876 = vmatprep.subr.mxu0 0.0
          %1877 = vmatpush1.msra.mxu0 %v1762
          %1878 = vmatprep.subr.mxu0 0.0
          %1879 = vmatpush2.msra.mxu0 0.0
          %1880 = vmatprep.subr.mxu0 0.0
          %1881 = vmatpush2.msra.mxu0 0.0
          %1882 = vmatprep.subr.mxu0 0.0
          %1883 = vmatpush2.msra.mxu0 0.0
          %1884 = vmatprep.subr.mxu0 0.0
          %1885 = vmatpush2.msra.mxu0 0.0
          %1886 = vmatprep.subr.mxu0 0.0
          %1887 = vmatpush2.msra.mxu0 0.0
          %1888 = vmatprep.subr.mxu0 0.0
          %1889 = vmatpush2.msra.mxu0 0.0
          %1890 = vmatprep.subr.mxu0 0.0
          %1891 = vmatpush2.msra.mxu0 0.0
          %1892 = vmatprep.subr.mxu0 0.0
          %1893 = vmatpush2.msra.mxu0 0.0
          %1894 = vmatprep.subr.mxu0 0.0
          %1895 = vmatpush2.msra.mxu0 0.0
          %1896 = vmatprep.subr.mxu0 0.0
          %1897 = vmatpush2.msra.mxu0 0.0
          %1898 = vmatprep.subr.mxu0 0.0
          %1899 = vmatpush2.msra.mxu0 0.0
          %1900 = vmatprep.subr.mxu0 0.0
          %1901 = vmatpush2.msra.mxu0 0.0
          %1902 = vmatprep.subr.mxu0 0.0
          %1903 = vmatpush2.msra.mxu0 0.0
          %1904 = vmatprep.subr.mxu0 0.0
          %1905 = vmatpush2.msra.mxu0 0.0
          %1906 = vmatprep.subr.mxu0 0.0
          %1907 = vmatpush2.msra.mxu0 0.0
          %1908 = vmatprep.subr.mxu0 0.0
          %1909 = vmatpush2.msra.mxu0 0.0
          %1910 = vmatprep.mubr.f32.mxu0 0.0
          %1911 = vmatmul.mubr.f32.gmra.mxu0 %v1844
          %v1912 = vpop.f32.mrf.mxu0
          %v1913 = vadd.f32 %v1840, %v1912
          %v1914 = vpop.f32.mrf.mxu0
          %1915 = vdwg.mxu0
          %v1916 = vld [vmem:[%s20] sm:$0x1]
          %v1917 = vadd.f32 %v1913, %v1916
          %1918 = vst [vmem:[%s828] sm:$0x1] %v1917
        $region112: #{bert_with_numeric_forward.1} parent=103 // pred_fallthru
          _
        %s1919 = sand.u32 %s571, 1
        %s1920 = scalar_lea.sflag [#allocation4], %s1919
        %s1921 = sand.u32 %s571, 1
        %s1922 = scalar_lea.vmem [#allocation3], %s1921
        // Predicated region
        $region113: #{bert_with_numeric_forward.1} parent=103 // pred_check
          %p1923 = pneg %p581
        $region114: #{bert_with_numeric_forward.1} parent=103 // pred_check_branch
          %1925 = sbr.rel (%p1923) target = $region116
        $region115: #{bert_with_numeric_forward.1} parent=103 // pred_region
          %s1927 = ssub.s32 16, 16
          %1928 = vsyncadd %s1920, %s1927
          %s1929 = smul.addr %s39, 16
          %s1930 = scalar_lea.hbm %s21, %s1929
          %s1932 = sshll.u32 %s1922, 4
          %s1933 = int_to_ptr.vmem [resolvable:$true] %s1932
          %1935 = dma.vmem_to_hbm [thread:$0]  %s1933, 16, %s1930, %s1920
        $region116: #{bert_with_numeric_forward.1} parent=103 // pred_fallthru
          _
      $region104: #{bert_with_numeric_forward.1} parent=5 // pred_fallthru
        _
      %p1936 = scmp.le.s32.totalorder 2, %s30
      // Predicated region
      $region117: #{bert_with_numeric_forward.1} parent=5 // pred_check
        %p1937 = pneg %p1936
      $region118: #{bert_with_numeric_forward.1} parent=5 // pred_check_branch
        %1939 = sbr.rel (%p1937) target = $region120
      $region119: #{bert_with_numeric_forward.1} parent=5 // pred_region
        %s1940 = ssub.s32 %s30, 2
        // Predicated region
        $region121: #{bert_with_numeric_forward.1} parent=119 // pred_check
          %p1941 = pneg %p587
        $region122: #{bert_with_numeric_forward.1} parent=119 // pred_check_branch
          %1943 = sbr.rel (%p1941) target = $region124
        $region123: #{bert_with_numeric_forward.1} parent=119 // pred_region
          %s1944 = sand.u32 %s572, 1
          %s1945 = scalar_lea.sflag [#allocation4], %s1944
          %s1946 = sand.u32 %s572, 1
          %s1947 = scalar_lea.vmem [#allocation3], %s1946
          %1948 = dma.done %s1945, 16
        $region124: #{bert_with_numeric_forward.1} parent=119 // pred_fallthru
          _
      $region120: #{bert_with_numeric_forward.1} parent=5 // pred_fallthru
        _
    $region6: #{bert_with_numeric_forward.1} parent=1 // loop_footer
      %s34 = sadd.s32 1, %s30
    $region7: #{bert_with_numeric_forward.1} parent=1 // loop_footer_branch
      %29 = sbr.rel target = $region3
    $region8: #{bert_with_numeric_forward.1} parent=1 // loop_exit
      _
    %1949 = vsyncpa [#allocation4], 1
    %s1950 = scalar_lea.sflag [#allocation4], 1
    %1951 = vsyncpa %s1950, 1

</llo_original>
